<compile_context>
chip_gen: v7x
topology: tpu7x:2x2x1
jax: 0.10.0
libtpu: 0.0.40
codegen_flags: <defaults>
</compile_context>

<pallas_src>
import jax
import jax.numpy as jnp
from jax.experimental import pallas as pl
from jax.experimental.pallas import tpu as pltpu


def _softplus_thresh(x, threshold=5.0):
    # PyTorch F.softplus(x, beta=1, threshold=5): linear for x > threshold.
    safe = jnp.minimum(x, threshold)
    return jnp.where(x > threshold, x, jnp.log1p(jnp.exp(safe)))


def hyperspec_ae_kernel(
    x_ref,
    w1_ref, b1_ref,
    w2_ref, b2_ref,
    w3_ref, b3_ref,
    w4_ref, b4_ref,
    bn_scale_ref, bn_shift_ref,
    wd_ref, bd_ref,
    enc_ref, dec_ref,
):
    # bf16 operands on the MXU (weights arrive pre-cast), f32 accumulation,
    # all elementwise math in f32.
    x = x_ref[...].astype(jnp.bfloat16)

    # ---- encoder hot path (matmuls on MXU, ReLU on VPU) ----
    h = jnp.maximum(
        jnp.dot(x, w1_ref[...], preferred_element_type=jnp.float32)
        + b1_ref[...], 0.0)
    h = jnp.maximum(
        jnp.dot(h.astype(jnp.bfloat16), w2_ref[...],
                preferred_element_type=jnp.float32) + b2_ref[...], 0.0)
    h = jnp.maximum(
        jnp.dot(h.astype(jnp.bfloat16), w3_ref[...],
                preferred_element_type=jnp.float32) + b3_ref[...], 0.0)
    h = jnp.maximum(
        jnp.dot(h.astype(jnp.bfloat16), w4_ref[...],
                preferred_element_type=jnp.float32) + b4_ref[...], 0.0)

    # ---- BatchNorm1d (eval mode, folded to scale/shift on host) ----
    h = h * bn_scale_ref[...] + bn_shift_ref[...]

    # ---- Softplus (beta=1, threshold=5) ----
    h = _softplus_thresh(h, 5.0)

    # ---- ASC: abundance sum-to-one constraint (row-normalize) ----
    # softplus output is strictly positive -> sum > 0; approx reciprocal (EUP)
    # makes rows sum to 1 only to ~1e-3 relative.
    row_sum = jnp.sum(h, axis=-1, keepdims=True)
    h = h * pl.reciprocal(row_sum, approx=True)

    # ---- GaussianDropout: identity in eval mode ----
    # TODO(synk): training-mode multiplicative N(1, alpha) noise not emitted.

    enc_ref[...] = h.astype(enc_ref.dtype)

    # ---- decoder ----
    d = jnp.dot(h.astype(jnp.bfloat16), wd_ref[...],
                preferred_element_type=jnp.float32) + bd_ref[...]
    dec_ref[...] = d.astype(dec_ref.dtype)


def init_params(key, num_bands=156, end_members=3):
    """Deterministic synthetic parameter init matching the PyTorch shapes."""
    dims = [num_bands, 9 * end_members, 6 * end_members, 3 * end_members, end_members]
    keys = jax.random.split(key, 6)
    params = {}
    for i in range(4):
        fan_in, fan_out = dims[i], dims[i + 1]
        bound = 1.0 / jnp.sqrt(fan_in)
        kw, kb = jax.random.split(keys[i])
        # stored pre-transposed as (in, out)
        params[f"w{i+1}"] = jax.random.uniform(
            kw, (fan_in, fan_out), jnp.float32, -bound, bound)
        params[f"b{i+1}"] = jax.random.uniform(
            kb, (1, fan_out), jnp.float32, -bound, bound)
    # BatchNorm1d(end_members), eval mode with fresh stats -> fold to scale/shift
    eps = 1e-5
    gamma = jnp.ones((1, end_members), jnp.float32)
    beta = jnp.zeros((1, end_members), jnp.float32)
    r_mean = jnp.zeros((1, end_members), jnp.float32)
    r_var = jnp.ones((1, end_members), jnp.float32)
    scale = gamma / jnp.sqrt(r_var + eps)
    shift = beta - r_mean * scale
    params["bn_scale"] = scale
    params["bn_shift"] = shift
    # decoder Linear(end_members, num_bands), xavier_normal on weight
    fan_in, fan_out = end_members, num_bands
    std = jnp.sqrt(2.0 / (fan_in + fan_out))
    params["wd"] = std * jax.random.normal(keys[4], (fan_in, fan_out), jnp.float32)
    params["bd"] = jax.random.uniform(
        keys[5], (1, fan_out), jnp.float32,
        -1.0 / jnp.sqrt(fan_in), 1.0 / jnp.sqrt(fan_in))
    return params


def hyperspec_ae_forward(img, params, num_bands=156, end_members=3, tile_b=2048):
    batch = img.shape[0]

    # Small batches: shrink the tile so grid_b >= 2 (v7x 2-TC sharding) and
    # row padding is minimal, instead of padding up to one giant tile.
    if batch <= tile_b:
        tile_b = max(16, pl.cdiv(pl.cdiv(batch, 2), 16) * 16)
    assert tile_b % 16 == 0, "tile_b must be a multiple of 16 (bf16 sublane tile)"

    grid_b = pl.cdiv(batch, tile_b)
    padded_batch = grid_b * tile_b

    # Ragged batch tail -> zero rows (harmless: ASC row sum stays > 0).
    x = img
    if padded_batch != batch:
        x = jnp.pad(x, ((0, padded_batch - batch), (0, 0)))

    bf = lambda a: a.astype(jnp.bfloat16)
    flat_inputs = (
        x,
        bf(params["w1"]), params["b1"],
        bf(params["w2"]), params["b2"],
        bf(params["w3"]), params["b3"],
        bf(params["w4"]), params["b4"],
        params["bn_scale"], params["bn_shift"],
        bf(params["wd"]), params["bd"],
    )

    const_map = lambda i: (0, 0)   # weights/biases resident across grid steps
    in_specs = [pl.BlockSpec((tile_b, num_bands), lambda i: (i, 0))]
    in_specs += [pl.BlockSpec(a.shape, const_map) for a in flat_inputs[1:]]

    out_specs = (
        pl.BlockSpec((tile_b, end_members), lambda i: (i, 0)),   # enc: real width
        pl.BlockSpec((tile_b, num_bands), lambda i: (i, 0)),     # dec: real width
    )
    out_shape = (
        jax.ShapeDtypeStruct((padded_batch, end_members), jnp.float32),
        jax.ShapeDtypeStruct((padded_batch, num_bands), jnp.bfloat16),
    )

    # Advisory cost estimate.
    macs_per_row = (num_bands * 9 * end_members
                    + 9 * end_members * 6 * end_members
                    + 6 * end_members * 3 * end_members
                    + 3 * end_members * end_members
                    + end_members * num_bands)
    weight_bytes = sum(int(a.size) * a.dtype.itemsize for a in flat_inputs[1:])
    bytes_per_row = (num_bands * x.dtype.itemsize     # img read
                     + end_members * 4                # enc write (f32)
                     + num_bands * 2)                 # dec write (bf16)
    cost = pl.CostEstimate(
        flops=2 * macs_per_row * padded_batch,
        transcendentals=3 * end_members * padded_batch,
        bytes_accessed=padded_batch * bytes_per_row + weight_bytes,
    )

    # Raise the scoped VMEM limit only for very large tiles (double-buffered
    # streamed blocks), leaving headroom for v7x's 64 MiB physical VMEM.
    blk_bytes = 2 * tile_b * bytes_per_row
    vmem_limit = (blk_bytes + (8 << 20)) if blk_bytes > (24 << 20) else None

    enc_p, dec_p = pl.pallas_call(
        hyperspec_ae_kernel,
        grid=(grid_b,),
        in_specs=in_specs,
        out_specs=out_specs,
        out_shape=out_shape,
        compiler_params=pltpu.CompilerParams(
            dimension_semantics=("parallel",),      # shard batch grid on v7x 2 TCs
            vmem_limit_bytes=vmem_limit),
        cost_estimate=cost,
    )(*flat_inputs)

    if padded_batch != batch:
        enc_p = enc_p[:batch]    # cheap row-prefix slice (only on ragged batches)
        dec_p = dec_p[:batch]
    return enc_p, dec_p


def reference_forward(img, params):
    """Plain-JAX f32 reference (natural, unpadded shapes) for sanity checking."""
    h = img
    for i in range(4):
        h = jnp.maximum(h @ params[f"w{i+1}"] + params[f"b{i+1}"], 0.0)
    h = h * params["bn_scale"] + params["bn_shift"]
    h = jnp.where(h > 5.0, h, jnp.log1p(jnp.exp(jnp.minimum(h, 5.0))))
    h = h / jnp.sum(h, axis=1, keepdims=True)
    dec = h @ params["wd"] + params["bd"]
    return h, dec


if __name__ == "__main__":
    num_bands, end_members = 156, 3
    batch = 256          # small demo batch; tile_b=128 -> grid of 2 (no padding)
    tile_b = 128         # use 2048-4096 for real hyperspectral images

    key = jax.random.PRNGKey(0)
    k_params, k_x = jax.random.split(key)

    params = init_params(k_params, num_bands, end_members)
    # hyperspectral pixels: nonnegative reflectances
    img = jax.random.uniform(k_x, (batch, num_bands), jnp.float32, 0.0, 1.0)

    enc, dec = hyperspec_ae_forward(img, params, num_bands, end_members,
                                    tile_b=tile_b)
    jax.block_until_ready((enc, dec))

    enc_ref, dec_ref = reference_forward(img, params)

    assert enc.shape == (batch, end_members)
    assert dec.shape == (batch, num_bands)
    # enc: bf16 MXU operands + approx reciprocal in ASC vs. full-f32 reference
    assert jnp.allclose(enc, enc_ref, atol=2e-2, rtol=2e-2)
    # dec: bf16 weights/activation casts + bf16 writeback
    assert jnp.allclose(dec.astype(jnp.float32), dec_ref, atol=3e-2, rtol=2e-2)
    # ASC check: encoded abundances sum to ~1 per pixel (approx reciprocal)
    assert jnp.allclose(jnp.sum(enc, axis=1), 1.0, atol=1e-2)

    print("KERNEL_OK")
</pallas_src>

<mosaic_0001>
module attributes {stable_mosaic.version = 11 : i64} {
  func.func @hyperspec_ae_kernel(%arg0: i32, %arg1: memref<128x156xf32, #tpu.memory_space<vmem>>, %arg2: memref<156x27xbf16, #tpu.memory_space<vmem>>, %arg3: memref<1x27xf32, #tpu.memory_space<vmem>>, %arg4: memref<27x18xbf16, #tpu.memory_space<vmem>>, %arg5: memref<1x18xf32, #tpu.memory_space<vmem>>, %arg6: memref<18x9xbf16, #tpu.memory_space<vmem>>, %arg7: memref<1x9xf32, #tpu.memory_space<vmem>>, %arg8: memref<9x3xbf16, #tpu.memory_space<vmem>>, %arg9: memref<1x3xf32, #tpu.memory_space<vmem>>, %arg10: memref<1x3xf32, #tpu.memory_space<vmem>>, %arg11: memref<1x3xf32, #tpu.memory_space<vmem>>, %arg12: memref<3x156xbf16, #tpu.memory_space<vmem>>, %arg13: memref<1x156xf32, #tpu.memory_space<vmem>>, %arg14: memref<128x3xf32, #tpu.memory_space<vmem>>, %arg15: memref<128x156xbf16, #tpu.memory_space<vmem>>) attributes {dimension_semantics = [#tpu.dimension_semantics<parallel>], iteration_bounds = array<i64: 2>, scalar_prefetch = 0 : i64, scratch_operands = 0 : i64, tpu.core_type = #tpu.core_type<tc>, window_params = [{transform_indices = @transform_0, window_bounds = array<i64: 128, 156>}, {pipeline_mode = #tpu.pipeline_mode<synchronous>, transform_indices = @transform_1, window_bounds = array<i64: 156, 27>}, {pipeline_mode = #tpu.pipeline_mode<synchronous>, transform_indices = @transform_2, window_bounds = array<i64: 1, 27>}, {pipeline_mode = #tpu.pipeline_mode<synchronous>, transform_indices = @transform_3, window_bounds = array<i64: 27, 18>}, {pipeline_mode = #tpu.pipeline_mode<synchronous>, transform_indices = @transform_4, window_bounds = array<i64: 1, 18>}, {pipeline_mode = #tpu.pipeline_mode<synchronous>, transform_indices = @transform_5, window_bounds = array<i64: 18, 9>}, {pipeline_mode = #tpu.pipeline_mode<synchronous>, transform_indices = @transform_6, window_bounds = array<i64: 1, 9>}, {pipeline_mode = #tpu.pipeline_mode<synchronous>, transform_indices = @transform_7, window_bounds = array<i64: 9, 3>}, {pipeline_mode = #tpu.pipeline_mode<synchronous>, transform_indices = @transform_8, window_bounds = array<i64: 1, 3>}, {pipeline_mode = #tpu.pipeline_mode<synchronous>, transform_indices = @transform_9, window_bounds = array<i64: 1, 3>}, {pipeline_mode = #tpu.pipeline_mode<synchronous>, transform_indices = @transform_10, window_bounds = array<i64: 1, 3>}, {pipeline_mode = #tpu.pipeline_mode<synchronous>, transform_indices = @transform_11, window_bounds = array<i64: 3, 156>}, {pipeline_mode = #tpu.pipeline_mode<synchronous>, transform_indices = @transform_12, window_bounds = array<i64: 1, 156>}, {transform_indices = @transform_13, window_bounds = array<i64: 128, 3>}, {transform_indices = @transform_14, window_bounds = array<i64: 128, 156>}]} {
    %c0 = arith.constant 0 : index
    %c0_0 = arith.constant 0 : index
    %0 = vector.load %arg1[%c0, %c0_0] : memref<128x156xf32, #tpu.memory_space<vmem>>, vector<128x156xf32>
    %1 = arith.truncf %0 : vector<128x156xf32> to vector<128x156xbf16>
    %c0_1 = arith.constant 0 : index
    %c0_2 = arith.constant 0 : index
    %2 = vector.load %arg2[%c0_1, %c0_2] : memref<156x27xbf16, #tpu.memory_space<vmem>>, vector<156x27xbf16>
    %cst = arith.constant dense<0.000000e+00> : vector<128x27xf32>
    %3 = tpu.matmul %1, %2, %cst {dimension_numbers = #tpu.dot_dimension_numbers<[1], [0], [0], [1], [0, 0, 1, 1], [], []>} : vector<128x156xbf16>, vector<156x27xbf16>, vector<128x27xf32> -> vector<128x27xf32>
    %c0_3 = arith.constant 0 : index
    %c0_4 = arith.constant 0 : index
    %4 = vector.load %arg3[%c0_3, %c0_4] : memref<1x27xf32, #tpu.memory_space<vmem>>, vector<1x27xf32>
    %5 = vector.broadcast %4 : vector<1x27xf32> to vector<128x27xf32>
    %6 = arith.addf %3, %5 : vector<128x27xf32>
    %cst_5 = arith.constant 0.000000e+00 : f32
    %7 = vector.broadcast %cst_5 : f32 to vector<128x27xf32>
    %8 = arith.maximumf %6, %7 : vector<128x27xf32>
    %9 = arith.truncf %8 : vector<128x27xf32> to vector<128x27xbf16>
    %c0_6 = arith.constant 0 : index
    %c0_7 = arith.constant 0 : index
    %10 = vector.load %arg4[%c0_6, %c0_7] : memref<27x18xbf16, #tpu.memory_space<vmem>>, vector<27x18xbf16>
    %cst_8 = arith.constant dense<0.000000e+00> : vector<128x18xf32>
    %11 = tpu.matmul %9, %10, %cst_8 {dimension_numbers = #tpu.dot_dimension_numbers<[1], [0], [0], [1], [0, 0, 1, 1], [], []>} : vector<128x27xbf16>, vector<27x18xbf16>, vector<128x18xf32> -> vector<128x18xf32>
    %c0_9 = arith.constant 0 : index
    %c0_10 = arith.constant 0 : index
    %12 = vector.load %arg5[%c0_9, %c0_10] : memref<1x18xf32, #tpu.memory_space<vmem>>, vector<1x18xf32>
    %13 = vector.broadcast %12 : vector<1x18xf32> to vector<128x18xf32>
    %14 = arith.addf %11, %13 : vector<128x18xf32>
    %cst_11 = arith.constant 0.000000e+00 : f32
    %15 = vector.broadcast %cst_11 : f32 to vector<128x18xf32>
    %16 = arith.maximumf %14, %15 : vector<128x18xf32>
    %17 = arith.truncf %16 : vector<128x18xf32> to vector<128x18xbf16>
    %c0_12 = arith.constant 0 : index
    %c0_13 = arith.constant 0 : index
    %18 = vector.load %arg6[%c0_12, %c0_13] : memref<18x9xbf16, #tpu.memory_space<vmem>>, vector<18x9xbf16>
    %cst_14 = arith.constant dense<0.000000e+00> : vector<128x9xf32>
    %19 = tpu.matmul %17, %18, %cst_14 {dimension_numbers = #tpu.dot_dimension_numbers<[1], [0], [0], [1], [0, 0, 1, 1], [], []>} : vector<128x18xbf16>, vector<18x9xbf16>, vector<128x9xf32> -> vector<128x9xf32>
    %c0_15 = arith.constant 0 : index
    %c0_16 = arith.constant 0 : index
    %20 = vector.load %arg7[%c0_15, %c0_16] : memref<1x9xf32, #tpu.memory_space<vmem>>, vector<1x9xf32>
    %21 = vector.broadcast %20 : vector<1x9xf32> to vector<128x9xf32>
    %22 = arith.addf %19, %21 : vector<128x9xf32>
    %cst_17 = arith.constant 0.000000e+00 : f32
    %23 = vector.broadcast %cst_17 : f32 to vector<128x9xf32>
    %24 = arith.maximumf %22, %23 : vector<128x9xf32>
    %25 = arith.truncf %24 : vector<128x9xf32> to vector<128x9xbf16>
    %c0_18 = arith.constant 0 : index
    %c0_19 = arith.constant 0 : index
    %26 = vector.load %arg8[%c0_18, %c0_19] : memref<9x3xbf16, #tpu.memory_space<vmem>>, vector<9x3xbf16>
    %cst_20 = arith.constant dense<0.000000e+00> : vector<128x3xf32>
    %27 = tpu.matmul %25, %26, %cst_20 {dimension_numbers = #tpu.dot_dimension_numbers<[1], [0], [0], [1], [0, 0, 1, 1], [], []>} : vector<128x9xbf16>, vector<9x3xbf16>, vector<128x3xf32> -> vector<128x3xf32>
    %c0_21 = arith.constant 0 : index
    %c0_22 = arith.constant 0 : index
    %28 = vector.load %arg9[%c0_21, %c0_22] : memref<1x3xf32, #tpu.memory_space<vmem>>, vector<1x3xf32>
    %29 = vector.broadcast %28 : vector<1x3xf32> to vector<128x3xf32>
    %30 = arith.addf %27, %29 : vector<128x3xf32>
    %cst_23 = arith.constant 0.000000e+00 : f32
    %31 = vector.broadcast %cst_23 : f32 to vector<128x3xf32>
    %32 = arith.maximumf %30, %31 : vector<128x3xf32>
    %c0_24 = arith.constant 0 : index
    %c0_25 = arith.constant 0 : index
    %33 = vector.load %arg10[%c0_24, %c0_25] : memref<1x3xf32, #tpu.memory_space<vmem>>, vector<1x3xf32>
    %34 = vector.broadcast %33 : vector<1x3xf32> to vector<128x3xf32>
    %35 = arith.mulf %32, %34 : vector<128x3xf32>
    %c0_26 = arith.constant 0 : index
    %c0_27 = arith.constant 0 : index
    %36 = vector.load %arg11[%c0_26, %c0_27] : memref<1x3xf32, #tpu.memory_space<vmem>>, vector<1x3xf32>
    %37 = vector.broadcast %36 : vector<1x3xf32> to vector<128x3xf32>
    %38 = arith.addf %35, %37 : vector<128x3xf32>
    %cst_28 = arith.constant 5.000000e+00 : f32
    %39 = vector.broadcast %cst_28 : f32 to vector<128x3xf32>
    %40 = arith.minimumf %38, %39 : vector<128x3xf32>
    %cst_29 = arith.constant 5.000000e+00 : f32
    %41 = vector.broadcast %cst_29 : f32 to vector<128x3xf32>
    %42 = arith.cmpf ogt, %38, %41 : vector<128x3xf32>
    %43 = math.exp %40 : vector<128x3xf32>
    %44 = math.log1p %43 : vector<128x3xf32>
    %45 = arith.select %42, %38, %44 : vector<128x3xi1>, vector<128x3xf32>
    %cst_30 = arith.constant dense<0.000000e+00> : vector<128xf32>
    %46 = vector.multi_reduction <add>, %45, %cst_30 [1] : vector<128x3xf32> to vector<128xf32>
    %47 = vector.shape_cast %46 : vector<128xf32> to vector<128x1xf32>
    %48 = tpu.reciprocal %47 {approx = true} : vector<128x1xf32> -> vector<128x1xf32>
    %49 = vector.broadcast %48 : vector<128x1xf32> to vector<128x3xf32>
    %50 = arith.mulf %45, %49 : vector<128x3xf32>
    %c0_31 = arith.constant 0 : index
    %c0_32 = arith.constant 0 : index
    %51 = vector.load %arg14[%c0_31, %c0_32] : memref<128x3xf32, #tpu.memory_space<vmem>>, vector<128x3xf32>
    tpu.vector_store %arg14[%c0_31, %c0_32], %50 {strides = array<i32>} : memref<128x3xf32, #tpu.memory_space<vmem>>, vector<128x3xf32>,
    %52 = arith.truncf %50 : vector<128x3xf32> to vector<128x3xbf16>
    %c0_33 = arith.constant 0 : index
    %c0_34 = arith.constant 0 : index
    %53 = vector.load %arg12[%c0_33, %c0_34] : memref<3x156xbf16, #tpu.memory_space<vmem>>, vector<3x156xbf16>
    %cst_35 = arith.constant dense<0.000000e+00> : vector<128x156xf32>
    %54 = tpu.matmul %52, %53, %cst_35 {dimension_numbers = #tpu.dot_dimension_numbers<[1], [0], [0], [1], [0, 0, 1, 1], [], []>} : vector<128x3xbf16>, vector<3x156xbf16>, vector<128x156xf32> -> vector<128x156xf32>
    %c0_36 = arith.constant 0 : index
    %c0_37 = arith.constant 0 : index
    %55 = vector.load %arg13[%c0_36, %c0_37] : memref<1x156xf32, #tpu.memory_space<vmem>>, vector<1x156xf32>
    %56 = vector.broadcast %55 : vector<1x156xf32> to vector<128x156xf32>
    %57 = arith.addf %54, %56 : vector<128x156xf32>
    %58 = arith.truncf %57 : vector<128x156xf32> to vector<128x156xbf16>
    %c0_38 = arith.constant 0 : index
    %c0_39 = arith.constant 0 : index
    %59 = vector.load %arg15[%c0_38, %c0_39] : memref<128x156xbf16, #tpu.memory_space<vmem>>, vector<128x156xbf16>
    tpu.vector_store %arg15[%c0_38, %c0_39], %58 {strides = array<i32>} : memref<128x156xbf16, #tpu.memory_space<vmem>>, vector<128x156xbf16>,
    return
  }
  func.func @transform_0(%arg0: i32) -> (i32, i32) {
    %c0_i32 = arith.constant 0 : i32
    %c0_i32_0 = arith.constant 0 : i32
    return %arg0, %c0_i32 : i32, i32
  }
  func.func @transform_1(%arg0: i32) -> (i32, i32) {
    %c0_i32 = arith.constant 0 : i32
    %c0_i32_0 = arith.constant 0 : i32
    %c0_i32_1 = arith.constant 0 : i32
    return %c0_i32, %c0_i32_0 : i32, i32
  }
  func.func @transform_2(%arg0: i32) -> (i32, i32) {
    %c0_i32 = arith.constant 0 : i32
    %c0_i32_0 = arith.constant 0 : i32
    %c0_i32_1 = arith.constant 0 : i32
    return %c0_i32, %c0_i32_0 : i32, i32
  }
  func.func @transform_3(%arg0: i32) -> (i32, i32) {
    %c0_i32 = arith.constant 0 : i32
    %c0_i32_0 = arith.constant 0 : i32
    %c0_i32_1 = arith.constant 0 : i32
    return %c0_i32, %c0_i32_0 : i32, i32
  }
  func.func @transform_4(%arg0: i32) -> (i32, i32) {
    %c0_i32 = arith.constant 0 : i32
    %c0_i32_0 = arith.constant 0 : i32
    %c0_i32_1 = arith.constant 0 : i32
    return %c0_i32, %c0_i32_0 : i32, i32
  }
  func.func @transform_5(%arg0: i32) -> (i32, i32) {
    %c0_i32 = arith.constant 0 : i32
    %c0_i32_0 = arith.constant 0 : i32
    %c0_i32_1 = arith.constant 0 : i32
    return %c0_i32, %c0_i32_0 : i32, i32
  }
  func.func @transform_6(%arg0: i32) -> (i32, i32) {
    %c0_i32 = arith.constant 0 : i32
    %c0_i32_0 = arith.constant 0 : i32
    %c0_i32_1 = arith.constant 0 : i32
    return %c0_i32, %c0_i32_0 : i32, i32
  }
  func.func @transform_7(%arg0: i32) -> (i32, i32) {
    %c0_i32 = arith.constant 0 : i32
    %c0_i32_0 = arith.constant 0 : i32
    %c0_i32_1 = arith.constant 0 : i32
    return %c0_i32, %c0_i32_0 : i32, i32
  }
  func.func @transform_8(%arg0: i32) -> (i32, i32) {
    %c0_i32 = arith.constant 0 : i32
    %c0_i32_0 = arith.constant 0 : i32
    %c0_i32_1 = arith.constant 0 : i32
    return %c0_i32, %c0_i32_0 : i32, i32
  }
  func.func @transform_9(%arg0: i32) -> (i32, i32) {
    %c0_i32 = arith.constant 0 : i32
    %c0_i32_0 = arith.constant 0 : i32
    %c0_i32_1 = arith.constant 0 : i32
    return %c0_i32, %c0_i32_0 : i32, i32
  }
  func.func @transform_10(%arg0: i32) -> (i32, i32) {
    %c0_i32 = arith.constant 0 : i32
    %c0_i32_0 = arith.constant 0 : i32
    %c0_i32_1 = arith.constant 0 : i32
    return %c0_i32, %c0_i32_0 : i32, i32
  }
  func.func @transform_11(%arg0: i32) -> (i32, i32) {
    %c0_i32 = arith.constant 0 : i32
    %c0_i32_0 = arith.constant 0 : i32
    %c0_i32_1 = arith.constant 0 : i32
    return %c0_i32, %c0_i32_0 : i32, i32
  }
  func.func @transform_12(%arg0: i32) -> (i32, i32) {
    %c0_i32 = arith.constant 0 : i32
    %c0_i32_0 = arith.constant 0 : i32
    %c0_i32_1 = arith.constant 0 : i32
    return %c0_i32, %c0_i32_0 : i32, i32
  }
  func.func @transform_13(%arg0: i32) -> (i32, i32) {
    %c0_i32 = arith.constant 0 : i32
    %c0_i32_0 = arith.constant 0 : i32
    return %arg0, %c0_i32 : i32, i32
  }
  func.func @transform_14(%arg0: i32) -> (i32, i32) {
    %c0_i32 = arith.constant 0 : i32
    %c0_i32_0 = arith.constant 0 : i32
    return %arg0, %c0_i32 : i32, i32
  }
}

</mosaic_0001>

<llo_original>
// kernel: tpu_custom_call.1
$region0: #{tpu_custom_call.1}
  #allocation0 [shape = 'u32[]', space=smem, size = 0x4, offset = 0x4, fixed_abs, tag = 'smem constant byte address 0x4 - core index']
  #allocation1 [shape = 'u32[144,128]{1,0:T(1,128)}', space=vmem, size = 0x12000, scoped, tag = 'internal scratch']
  %s0 = inlined_call_operand.vmem [shape: f32[256,156], index: 0, kind: input, shape index: {}]
  %s1 = inlined_call_operand.vmem [shape: bf16[156,27], index: 1, kind: input, shape index: {}]
  %s2 = inlined_call_operand.vmem [shape: f32[1,27], index: 2, kind: input, shape index: {}]
  %s3 = inlined_call_operand.vmem [shape: bf16[27,18], index: 3, kind: input, shape index: {}]
  %s4 = inlined_call_operand.vmem [shape: f32[1,18], index: 4, kind: input, shape index: {}]
  %s5 = inlined_call_operand.vmem [shape: bf16[18,9], index: 5, kind: input, shape index: {}]
  %s6 = inlined_call_operand.vmem [shape: f32[1,9], index: 6, kind: input, shape index: {}]
  %s7 = inlined_call_operand.vmem [shape: bf16[9,3], index: 7, kind: input, shape index: {}]
  %s8 = inlined_call_operand.vmem [shape: f32[1,3], index: 8, kind: input, shape index: {}]
  %s9 = inlined_call_operand.vmem [shape: f32[1,3], index: 9, kind: input, shape index: {}]
  %s10 = inlined_call_operand.vmem [shape: f32[1,3], index: 10, kind: input, shape index: {}]
  %s11 = inlined_call_operand.vmem [shape: bf16[3,156], index: 11, kind: input, shape index: {}]
  %s12 = inlined_call_operand.vmem [shape: f32[1,156], index: 12, kind: input, shape index: {}]
  %s13 = inlined_call_operand.vmem [shape: f32[256,3], index: 13, kind: output, shape index: {0}]
  %s14 = inlined_call_operand.vmem [shape: bf16[256,156], index: 14, kind: output, shape index: {1}]
  %15 = xla_tuple %s13, %s14
  %s16 = sld [smem:[#allocation0]]
  $region93: #{tpu_custom_call.1} parent=0
    _
  %s18 = ssub.s32 1, %s16
  %s19 = scalar_select 0, %s18, %s16
  loop: start=0, step=1, limit=4
  $region2: #{tpu_custom_call.1} parent=0 // loop_pre_header
    _
  $region3: #{tpu_custom_call.1} parent=0 // loop_header
    %s21 = sphi 0, %s25
    %p22 = scmp.ge.s32.totalorder %s21, 4
    %s31 = sphi 0, %s33
    %s34 = sphi 0, %s31
    %s35 = sphi 0, %s34
    %s51 = sphi 0, %s35
    %s55 = sphi 0, %s55
    %s57 = sphi 0, %s55
    %s58 = sphi 0, %s57
    %s72 = sphi 0, %s58
    %s76 = sphi 0, %s76
    %s78 = sphi 0, %s76
    %s79 = sphi 0, %s78
    %s93 = sphi 0, %s79
    %s97 = sphi 0, %s97
    %s99 = sphi 0, %s97
    %s100 = sphi 0, %s99
    %s114 = sphi 0, %s100
    %s118 = sphi 0, %s118
    %s120 = sphi 0, %s118
    %s121 = sphi 0, %s120
    %s135 = sphi 0, %s121
    %s139 = sphi 0, %s139
    %s141 = sphi 0, %s139
    %s142 = sphi 0, %s141
    %s156 = sphi 0, %s142
    %s160 = sphi 0, %s160
    %s162 = sphi 0, %s160
    %s163 = sphi 0, %s162
    %s177 = sphi 0, %s163
    %s181 = sphi 0, %s181
    %s183 = sphi 0, %s181
    %s184 = sphi 0, %s183
    %s198 = sphi 0, %s184
    %s202 = sphi 0, %s202
    %s204 = sphi 0, %s202
    %s205 = sphi 0, %s204
    %s219 = sphi 0, %s205
    %s223 = sphi 0, %s223
    %s225 = sphi 0, %s223
    %s226 = sphi 0, %s225
    %s240 = sphi 0, %s226
    %s244 = sphi 0, %s244
    %s246 = sphi 0, %s244
    %s247 = sphi 0, %s246
    %s261 = sphi 0, %s247
    %s265 = sphi 0, %s265
    %s267 = sphi 0, %s265
    %s268 = sphi 0, %s267
    %s282 = sphi 0, %s268
    %s286 = sphi 0, %s286
    %s288 = sphi 0, %s286
    %s289 = sphi 0, %s288
    %s303 = sphi 0, %s289
    %s309 = sphi 0, %s311
    %s312 = sphi 0, %s309
    %s313 = sphi 0, %s312
    %s329 = sphi 0, %s313
    %s335 = sphi 0, %s337
    %s338 = sphi 0, %s335
    %s339 = sphi 0, %s338
    %s355 = sphi 0, %s339
  $region4: #{tpu_custom_call.1} parent=0 // loop_header_branch
    %24 = sbr.rel (%p22) target = $region8
  $region5: #{tpu_custom_call.1} parent=0 // loop_body
    %s26 = ssub.s32 %s21, 1
    %s27 = ssub.s32 %s21, 2
    %s28 = sadd.s32 %s21, 1
    %s29 = ssub.s32 %s21, %s28
    %p30 = scmp.eq.s32.totalorder %s29, 0
    %s32 = sadd.s32 %s31, 1
    %s33 = scalar_select %p30, %s31, %s32
    %p36 = pneg %p30
    %p37 = scmp.eq.s32.totalorder %s21, 1
    %p38 = por %p36, %p37
    %p39 = scmp.ne.s32.totalorder %s31, %s34
    %p40 = scmp.eq.s32.totalorder %s21, 0
    %p41 = por %p39, %p40
    %p42 = scmp.ne.s32.totalorder %s31, %s34
    %p43 = scmp.eq.s32.totalorder %s26, 1
    %p44 = por %p42, %p43
    %p45 = scmp.ne.s32.totalorder %s34, %s35
    %p46 = scmp.eq.s32.totalorder %s26, 0
    %p47 = por %p45, %p46
    %p48 = scmp.ne.s32.totalorder %s34, %s35
    %p49 = scmp.eq.s32.totalorder %s27, 1
    %p50 = por %p48, %p49
    %p52 = scmp.ne.s32.totalorder %s35, %s51
    %p53 = scmp.eq.s32.totalorder %s27, 0
    %p54 = por %p52, %p53
    %s56 = sadd.s32 %s55, 1
    %p59 = scmp.eq.s32.totalorder %s21, 1
    %p60 = scmp.ne.s32.totalorder %s55, %s57
    %p61 = scmp.eq.s32.totalorder %s21, 0
    %p62 = por %p60, %p61
    %p63 = scmp.ne.s32.totalorder %s55, %s57
    %p64 = scmp.eq.s32.totalorder %s26, 1
    %p65 = por %p63, %p64
    %p66 = scmp.ne.s32.totalorder %s57, %s58
    %p67 = scmp.eq.s32.totalorder %s26, 0
    %p68 = por %p66, %p67
    %p69 = scmp.ne.s32.totalorder %s57, %s58
    %p70 = scmp.eq.s32.totalorder %s27, 1
    %p71 = por %p69, %p70
    %p73 = scmp.ne.s32.totalorder %s58, %s72
    %p74 = scmp.eq.s32.totalorder %s27, 0
    %p75 = por %p73, %p74
    %s77 = sadd.s32 %s76, 1
    %p80 = scmp.eq.s32.totalorder %s21, 1
    %p81 = scmp.ne.s32.totalorder %s76, %s78
    %p82 = scmp.eq.s32.totalorder %s21, 0
    %p83 = por %p81, %p82
    %p84 = scmp.ne.s32.totalorder %s76, %s78
    %p85 = scmp.eq.s32.totalorder %s26, 1
    %p86 = por %p84, %p85
    %p87 = scmp.ne.s32.totalorder %s78, %s79
    %p88 = scmp.eq.s32.totalorder %s26, 0
    %p89 = por %p87, %p88
    %p90 = scmp.ne.s32.totalorder %s78, %s79
    %p91 = scmp.eq.s32.totalorder %s27, 1
    %p92 = por %p90, %p91
    %p94 = scmp.ne.s32.totalorder %s79, %s93
    %p95 = scmp.eq.s32.totalorder %s27, 0
    %p96 = por %p94, %p95
    %s98 = sadd.s32 %s97, 1
    %p101 = scmp.eq.s32.totalorder %s21, 1
    %p102 = scmp.ne.s32.totalorder %s97, %s99
    %p103 = scmp.eq.s32.totalorder %s21, 0
    %p104 = por %p102, %p103
    %p105 = scmp.ne.s32.totalorder %s97, %s99
    %p106 = scmp.eq.s32.totalorder %s26, 1
    %p107 = por %p105, %p106
    %p108 = scmp.ne.s32.totalorder %s99, %s100
    %p109 = scmp.eq.s32.totalorder %s26, 0
    %p110 = por %p108, %p109
    %p111 = scmp.ne.s32.totalorder %s99, %s100
    %p112 = scmp.eq.s32.totalorder %s27, 1
    %p113 = por %p111, %p112
    %p115 = scmp.ne.s32.totalorder %s100, %s114
    %p116 = scmp.eq.s32.totalorder %s27, 0
    %p117 = por %p115, %p116
    %s119 = sadd.s32 %s118, 1
    %p122 = scmp.eq.s32.totalorder %s21, 1
    %p123 = scmp.ne.s32.totalorder %s118, %s120
    %p124 = scmp.eq.s32.totalorder %s21, 0
    %p125 = por %p123, %p124
    %p126 = scmp.ne.s32.totalorder %s118, %s120
    %p127 = scmp.eq.s32.totalorder %s26, 1
    %p128 = por %p126, %p127
    %p129 = scmp.ne.s32.totalorder %s120, %s121
    %p130 = scmp.eq.s32.totalorder %s26, 0
    %p131 = por %p129, %p130
    %p132 = scmp.ne.s32.totalorder %s120, %s121
    %p133 = scmp.eq.s32.totalorder %s27, 1
    %p134 = por %p132, %p133
    %p136 = scmp.ne.s32.totalorder %s121, %s135
    %p137 = scmp.eq.s32.totalorder %s27, 0
    %p138 = por %p136, %p137
    %s140 = sadd.s32 %s139, 1
    %p143 = scmp.eq.s32.totalorder %s21, 1
    %p144 = scmp.ne.s32.totalorder %s139, %s141
    %p145 = scmp.eq.s32.totalorder %s21, 0
    %p146 = por %p144, %p145
    %p147 = scmp.ne.s32.totalorder %s139, %s141
    %p148 = scmp.eq.s32.totalorder %s26, 1
    %p149 = por %p147, %p148
    %p150 = scmp.ne.s32.totalorder %s141, %s142
    %p151 = scmp.eq.s32.totalorder %s26, 0
    %p152 = por %p150, %p151
    %p153 = scmp.ne.s32.totalorder %s141, %s142
    %p154 = scmp.eq.s32.totalorder %s27, 1
    %p155 = por %p153, %p154
    %p157 = scmp.ne.s32.totalorder %s142, %s156
    %p158 = scmp.eq.s32.totalorder %s27, 0
    %p159 = por %p157, %p158
    %s161 = sadd.s32 %s160, 1
    %p164 = scmp.eq.s32.totalorder %s21, 1
    %p165 = scmp.ne.s32.totalorder %s160, %s162
    %p166 = scmp.eq.s32.totalorder %s21, 0
    %p167 = por %p165, %p166
    %p168 = scmp.ne.s32.totalorder %s160, %s162
    %p169 = scmp.eq.s32.totalorder %s26, 1
    %p170 = por %p168, %p169
    %p171 = scmp.ne.s32.totalorder %s162, %s163
    %p172 = scmp.eq.s32.totalorder %s26, 0
    %p173 = por %p171, %p172
    %p174 = scmp.ne.s32.totalorder %s162, %s163
    %p175 = scmp.eq.s32.totalorder %s27, 1
    %p176 = por %p174, %p175
    %p178 = scmp.ne.s32.totalorder %s163, %s177
    %p179 = scmp.eq.s32.totalorder %s27, 0
    %p180 = por %p178, %p179
    %s182 = sadd.s32 %s181, 1
    %p185 = scmp.eq.s32.totalorder %s21, 1
    %p186 = scmp.ne.s32.totalorder %s181, %s183
    %p187 = scmp.eq.s32.totalorder %s21, 0
    %p188 = por %p186, %p187
    %p189 = scmp.ne.s32.totalorder %s181, %s183
    %p190 = scmp.eq.s32.totalorder %s26, 1
    %p191 = por %p189, %p190
    %p192 = scmp.ne.s32.totalorder %s183, %s184
    %p193 = scmp.eq.s32.totalorder %s26, 0
    %p194 = por %p192, %p193
    %p195 = scmp.ne.s32.totalorder %s183, %s184
    %p196 = scmp.eq.s32.totalorder %s27, 1
    %p197 = por %p195, %p196
    %p199 = scmp.ne.s32.totalorder %s184, %s198
    %p200 = scmp.eq.s32.totalorder %s27, 0
    %p201 = por %p199, %p200
    %s203 = sadd.s32 %s202, 1
    %p206 = scmp.eq.s32.totalorder %s21, 1
    %p207 = scmp.ne.s32.totalorder %s202, %s204
    %p208 = scmp.eq.s32.totalorder %s21, 0
    %p209 = por %p207, %p208
    %p210 = scmp.ne.s32.totalorder %s202, %s204
    %p211 = scmp.eq.s32.totalorder %s26, 1
    %p212 = por %p210, %p211
    %p213 = scmp.ne.s32.totalorder %s204, %s205
    %p214 = scmp.eq.s32.totalorder %s26, 0
    %p215 = por %p213, %p214
    %p216 = scmp.ne.s32.totalorder %s204, %s205
    %p217 = scmp.eq.s32.totalorder %s27, 1
    %p218 = por %p216, %p217
    %p220 = scmp.ne.s32.totalorder %s205, %s219
    %p221 = scmp.eq.s32.totalorder %s27, 0
    %p222 = por %p220, %p221
    %s224 = sadd.s32 %s223, 1
    %p227 = scmp.eq.s32.totalorder %s21, 1
    %p228 = scmp.ne.s32.totalorder %s223, %s225
    %p229 = scmp.eq.s32.totalorder %s21, 0
    %p230 = por %p228, %p229
    %p231 = scmp.ne.s32.totalorder %s223, %s225
    %p232 = scmp.eq.s32.totalorder %s26, 1
    %p233 = por %p231, %p232
    %p234 = scmp.ne.s32.totalorder %s225, %s226
    %p235 = scmp.eq.s32.totalorder %s26, 0
    %p236 = por %p234, %p235
    %p237 = scmp.ne.s32.totalorder %s225, %s226
    %p238 = scmp.eq.s32.totalorder %s27, 1
    %p239 = por %p237, %p238
    %p241 = scmp.ne.s32.totalorder %s226, %s240
    %p242 = scmp.eq.s32.totalorder %s27, 0
    %p243 = por %p241, %p242
    %s245 = sadd.s32 %s244, 1
    %p248 = scmp.eq.s32.totalorder %s21, 1
    %p249 = scmp.ne.s32.totalorder %s244, %s246
    %p250 = scmp.eq.s32.totalorder %s21, 0
    %p251 = por %p249, %p250
    %p252 = scmp.ne.s32.totalorder %s244, %s246
    %p253 = scmp.eq.s32.totalorder %s26, 1
    %p254 = por %p252, %p253
    %p255 = scmp.ne.s32.totalorder %s246, %s247
    %p256 = scmp.eq.s32.totalorder %s26, 0
    %p257 = por %p255, %p256
    %p258 = scmp.ne.s32.totalorder %s246, %s247
    %p259 = scmp.eq.s32.totalorder %s27, 1
    %p260 = por %p258, %p259
    %p262 = scmp.ne.s32.totalorder %s247, %s261
    %p263 = scmp.eq.s32.totalorder %s27, 0
    %p264 = por %p262, %p263
    %s266 = sadd.s32 %s265, 1
    %p269 = scmp.eq.s32.totalorder %s21, 1
    %p270 = scmp.ne.s32.totalorder %s265, %s267
    %p271 = scmp.eq.s32.totalorder %s21, 0
    %p272 = por %p270, %p271
    %p273 = scmp.ne.s32.totalorder %s265, %s267
    %p274 = scmp.eq.s32.totalorder %s26, 1
    %p275 = por %p273, %p274
    %p276 = scmp.ne.s32.totalorder %s267, %s268
    %p277 = scmp.eq.s32.totalorder %s26, 0
    %p278 = por %p276, %p277
    %p279 = scmp.ne.s32.totalorder %s267, %s268
    %p280 = scmp.eq.s32.totalorder %s27, 1
    %p281 = por %p279, %p280
    %p283 = scmp.ne.s32.totalorder %s268, %s282
    %p284 = scmp.eq.s32.totalorder %s27, 0
    %p285 = por %p283, %p284
    %s287 = sadd.s32 %s286, 1
    %p290 = scmp.eq.s32.totalorder %s21, 1
    %p291 = scmp.ne.s32.totalorder %s286, %s288
    %p292 = scmp.eq.s32.totalorder %s21, 0
    %p293 = por %p291, %p292
    %p294 = scmp.ne.s32.totalorder %s286, %s288
    %p295 = scmp.eq.s32.totalorder %s26, 1
    %p296 = por %p294, %p295
    %p297 = scmp.ne.s32.totalorder %s288, %s289
    %p298 = scmp.eq.s32.totalorder %s26, 0
    %p299 = por %p297, %p298
    %p300 = scmp.ne.s32.totalorder %s288, %s289
    %p301 = scmp.eq.s32.totalorder %s27, 1
    %p302 = por %p300, %p301
    %p304 = scmp.ne.s32.totalorder %s289, %s303
    %p305 = scmp.eq.s32.totalorder %s27, 0
    %p306 = por %p304, %p305
    %s307 = ssub.s32 %s21, %s28
    %p308 = scmp.eq.s32.totalorder %s307, 0
    %s310 = sadd.s32 %s309, 1
    %s311 = scalar_select %p308, %s309, %s310
    %p314 = pneg %p308
    %p315 = scmp.eq.s32.totalorder %s21, 1
    %p316 = por %p314, %p315
    %p317 = scmp.ne.s32.totalorder %s309, %s312
    %p318 = scmp.eq.s32.totalorder %s21, 0
    %p319 = por %p317, %p318
    %p320 = scmp.ne.s32.totalorder %s309, %s312
    %p321 = scmp.eq.s32.totalorder %s26, 1
    %p322 = por %p320, %p321
    %p323 = scmp.ne.s32.totalorder %s312, %s313
    %p324 = scmp.eq.s32.totalorder %s26, 0
    %p325 = por %p323, %p324
    %p326 = scmp.ne.s32.totalorder %s312, %s313
    %p327 = scmp.eq.s32.totalorder %s27, 1
    %p328 = por %p326, %p327
    %p330 = scmp.ne.s32.totalorder %s313, %s329
    %p331 = scmp.eq.s32.totalorder %s27, 0
    %p332 = por %p330, %p331
    %s333 = ssub.s32 %s21, %s28
    %p334 = scmp.eq.s32.totalorder %s333, 0
    %s336 = sadd.s32 %s335, 1
    %s337 = scalar_select %p334, %s335, %s336
    %p340 = pneg %p334
    %p341 = scmp.eq.s32.totalorder %s21, 1
    %p342 = por %p340, %p341
    %p343 = scmp.ne.s32.totalorder %s335, %s338
    %p344 = scmp.eq.s32.totalorder %s21, 0
    %p345 = por %p343, %p344
    %p346 = scmp.ne.s32.totalorder %s335, %s338
    %p347 = scmp.eq.s32.totalorder %s26, 1
    %p348 = por %p346, %p347
    %p349 = scmp.ne.s32.totalorder %s338, %s339
    %p350 = scmp.eq.s32.totalorder %s26, 0
    %p351 = por %p349, %p350
    %p352 = scmp.ne.s32.totalorder %s338, %s339
    %p353 = scmp.eq.s32.totalorder %s27, 1
    %p354 = por %p352, %p353
    %p356 = scmp.ne.s32.totalorder %s339, %s355
    %p357 = scmp.eq.s32.totalorder %s27, 0
    %p358 = por %p356, %p357
    %p359 = scmp.le.s32.totalorder 1, %s21
    %p360 = scmp.lt.s32.totalorder %s21, 3
    %p361 = pnand %p359, %p360
    %p362 = pneg %p361
    // Predicated region
    $region9: #{tpu_custom_call.1} parent=5 // pred_check
      _
    $region10: #{tpu_custom_call.1} parent=5 // pred_check_branch
      %364 = sbr.rel (%p361) target = $region12
    $region11: #{tpu_custom_call.1} parent=5 // pred_region
      %s365 = ssub.s32 %s21, 1
      // Predicated region
      $region13: #{tpu_custom_call.1} parent=11 // pred_check
        %p366 = pneg %p68
      $region14: #{tpu_custom_call.1} parent=11 // pred_check_branch
        %368 = sbr.rel (%p366) target = $region16
      $region15: #{tpu_custom_call.1} parent=11 // pred_region
        _
      $region16: #{tpu_custom_call.1} parent=11 // pred_fallthru
        _
      // Predicated region
      $region17: #{tpu_custom_call.1} parent=11 // pred_check
        %p369 = pneg %p89
      $region18: #{tpu_custom_call.1} parent=11 // pred_check_branch
        %371 = sbr.rel (%p369) target = $region20
      $region19: #{tpu_custom_call.1} parent=11 // pred_region
        _
      $region20: #{tpu_custom_call.1} parent=11 // pred_fallthru
        _
      // Predicated region
      $region21: #{tpu_custom_call.1} parent=11 // pred_check
        %p372 = pneg %p110
      $region22: #{tpu_custom_call.1} parent=11 // pred_check_branch
        %374 = sbr.rel (%p372) target = $region24
      $region23: #{tpu_custom_call.1} parent=11 // pred_region
        _
      $region24: #{tpu_custom_call.1} parent=11 // pred_fallthru
        _
      // Predicated region
      $region25: #{tpu_custom_call.1} parent=11 // pred_check
        %p375 = pneg %p131
      $region26: #{tpu_custom_call.1} parent=11 // pred_check_branch
        %377 = sbr.rel (%p375) target = $region28
      $region27: #{tpu_custom_call.1} parent=11 // pred_region
        _
      $region28: #{tpu_custom_call.1} parent=11 // pred_fallthru
        _
      // Predicated region
      $region29: #{tpu_custom_call.1} parent=11 // pred_check
        %p378 = pneg %p152
      $region30: #{tpu_custom_call.1} parent=11 // pred_check_branch
        %380 = sbr.rel (%p378) target = $region32
      $region31: #{tpu_custom_call.1} parent=11 // pred_region
        _
      $region32: #{tpu_custom_call.1} parent=11 // pred_fallthru
        _
      // Predicated region
      $region33: #{tpu_custom_call.1} parent=11 // pred_check
        %p381 = pneg %p173
      $region34: #{tpu_custom_call.1} parent=11 // pred_check_branch
        %383 = sbr.rel (%p381) target = $region36
      $region35: #{tpu_custom_call.1} parent=11 // pred_region
        _
      $region36: #{tpu_custom_call.1} parent=11 // pred_fallthru
        _
      // Predicated region
      $region37: #{tpu_custom_call.1} parent=11 // pred_check
        %p384 = pneg %p194
      $region38: #{tpu_custom_call.1} parent=11 // pred_check_branch
        %386 = sbr.rel (%p384) target = $region40
      $region39: #{tpu_custom_call.1} parent=11 // pred_region
        _
      $region40: #{tpu_custom_call.1} parent=11 // pred_fallthru
        _
      // Predicated region
      $region41: #{tpu_custom_call.1} parent=11 // pred_check
        %p387 = pneg %p215
      $region42: #{tpu_custom_call.1} parent=11 // pred_check_branch
        %389 = sbr.rel (%p387) target = $region44
      $region43: #{tpu_custom_call.1} parent=11 // pred_region
        _
      $region44: #{tpu_custom_call.1} parent=11 // pred_fallthru
        _
      // Predicated region
      $region45: #{tpu_custom_call.1} parent=11 // pred_check
        %p390 = pneg %p236
      $region46: #{tpu_custom_call.1} parent=11 // pred_check_branch
        %392 = sbr.rel (%p390) target = $region48
      $region47: #{tpu_custom_call.1} parent=11 // pred_region
        _
      $region48: #{tpu_custom_call.1} parent=11 // pred_fallthru
        _
      // Predicated region
      $region49: #{tpu_custom_call.1} parent=11 // pred_check
        %p393 = pneg %p257
      $region50: #{tpu_custom_call.1} parent=11 // pred_check_branch
        %395 = sbr.rel (%p393) target = $region52
      $region51: #{tpu_custom_call.1} parent=11 // pred_region
        _
      $region52: #{tpu_custom_call.1} parent=11 // pred_fallthru
        _
      // Predicated region
      $region53: #{tpu_custom_call.1} parent=11 // pred_check
        %p396 = pneg %p278
      $region54: #{tpu_custom_call.1} parent=11 // pred_check_branch
        %398 = sbr.rel (%p396) target = $region56
      $region55: #{tpu_custom_call.1} parent=11 // pred_region
        _
      $region56: #{tpu_custom_call.1} parent=11 // pred_fallthru
        _
      // Predicated region
      $region57: #{tpu_custom_call.1} parent=11 // pred_check
        %p399 = pneg %p299
      $region58: #{tpu_custom_call.1} parent=11 // pred_check_branch
        %401 = sbr.rel (%p399) target = $region60
      $region59: #{tpu_custom_call.1} parent=11 // pred_region
        _
      $region60: #{tpu_custom_call.1} parent=11 // pred_fallthru
        _
    $region12: #{tpu_custom_call.1} parent=5 // pred_fallthru
      _
    %p402 = scmp.lt.s32.totalorder %s21, 2
    // Predicated region
    $region61: #{tpu_custom_call.1} parent=5 // pred_check
      %p403 = pneg %p402
    $region62: #{tpu_custom_call.1} parent=5 // pred_check_branch
      %405 = sbr.rel (%p403) target = $region64
    $region63: #{tpu_custom_call.1} parent=5 // pred_region
      // Predicated region
      $region65: #{tpu_custom_call.1} parent=63 // pred_check
        %p406 = pneg %p41
      $region66: #{tpu_custom_call.1} parent=63 // pred_check_branch
        %408 = sbr.rel (%p406) target = $region68
      $region67: #{tpu_custom_call.1} parent=63 // pred_region
        %s409 = smul.u32 16, %s21
        %p410 = scmp.lt.s32.totalorder %s409, 31
        %s411 = scalar_select %p410, %s409, 31
        %s412 = smul.addr %s411, 2
        %s413 = smul.addr %s412, 8
        %s414 = scalar_lea.vmem %s0, %s413
        %s415 = smul.u32 16, %s21
      $region68: #{tpu_custom_call.1} parent=63 // pred_fallthru
        _
    $region64: #{tpu_custom_call.1} parent=5 // pred_fallthru
      _
    %p416 = scmp.le.s32.totalorder 1, %s21
    %p417 = scmp.lt.s32.totalorder %s21, 3
    %p418 = pnand %p416, %p417
    %p419 = pneg %p418
    // Predicated region
    $region69: #{tpu_custom_call.1} parent=5 // pred_check
      _
    $region70: #{tpu_custom_call.1} parent=5 // pred_check_branch
      %421 = sbr.rel (%p418) target = $region72
    $region71: #{tpu_custom_call.1} parent=5 // pred_region
      %s422 = ssub.s32 %s21, 1
      %s423 = smul.u32 16, %s26
      %p424 = scmp.lt.s32.totalorder %s423, 31
      %s425 = scalar_select %p424, %s423, 31
      %s426 = smul.addr %s425, 2
      %s427 = smul.addr %s426, 8
      %s428 = scalar_lea.vmem %s0, %s427
      %p429 = pneg %p47
      %p430 = pneg %p44
      %p431 = pneg %p68
      %p432 = pneg %p65
      %p433 = pneg %p89
      %p434 = pneg %p86
      %p435 = pneg %p110
      %p436 = pneg %p107
      %p437 = pneg %p131
      %p438 = pneg %p128
      %p439 = pneg %p152
      %p440 = pneg %p149
      %p441 = pneg %p173
      %p442 = pneg %p170
      %p443 = pneg %p194
      %p444 = pneg %p191
      %p445 = pneg %p215
      %p446 = pneg %p212
      %p447 = pneg %p236
      %p448 = pneg %p233
      %p449 = pneg %p257
      %p450 = pneg %p254
      %p451 = pneg %p278
      %p452 = pneg %p275
      %p453 = pneg %p299
      %p454 = pneg %p296
      %p455 = pneg %p325
      %p456 = pneg %p322
      %s457 = smul.u32 16, %s26
      %p458 = scmp.lt.s32.totalorder %s457, 31
      %s459 = scalar_select %p458, %s457, 31
      %s460 = smul.addr %s459, 8
      %s461 = scalar_lea.vmem %s13, %s460
      %p462 = pneg %p351
      %p463 = pneg %p348
      %s464 = smul.u32 16, %s26
      %p465 = scmp.lt.s32.totalorder %s464, 31
      %s466 = scalar_select %p465, %s464, 31
      %s467 = smul.addr %s466, 2
      %s468 = smul.addr %s467, 4
      %s469 = scalar_lea.vmem %s14, %s468
      %s470 = smul.u32 16, %s26
      %p471 = scmp.lt.s32.totalorder %s470, 31
      %s472 = scalar_select %p471, %s470, 31
      %s473 = smul.addr %s472, 2
      %s474 = smul.addr %s473, 8
      %s475 = scalar_lea.vmem %s0, %s474
      %s476 = smul.u32 16, %s26
      %s477 = smul.u32 16, %s26
      %p478 = scmp.lt.s32.totalorder %s477, 31
      %s479 = scalar_select %p478, %s477, 31
      %s480 = smul.addr %s479, 8
      %s481 = scalar_lea.vmem %s13, %s480
      %s482 = smul.u32 16, %s26
      %s483 = smul.u32 16, %s26
      %p484 = scmp.lt.s32.totalorder %s483, 31
      %s485 = scalar_select %p484, %s483, 31
      %s486 = smul.addr %s485, 2
      %s487 = smul.addr %s486, 4
      %s488 = scalar_lea.vmem %s14, %s487
      %s489 = smul.u32 16, %s26
      %v491 = vld [vmem:[%s475] sm:$0xff]
      %v492 = vld [vmem:[%s475 + $0x8] sm:$0xff]
      %v493 = vld [vmem:[%s475 + $0x10] sm:$0xff]
      %v494 = vld [vmem:[%s475 + $0x18] sm:$0xff]
      %v495 = vld [vmem:[%s475 + $0x20] sm:$0xff]
      %v496 = vld [vmem:[%s475 + $0x28] sm:$0xff]
      %v497 = vld [vmem:[%s475 + $0x30] sm:$0xff]
      %v498 = vld [vmem:[%s475 + $0x38] sm:$0xff]
      %v499 = vld [vmem:[%s475 + $0x40] sm:$0xff]
      %v500 = vld [vmem:[%s475 + $0x48] sm:$0xff]
      %v501 = vld [vmem:[%s475 + $0x50] sm:$0xff]
      %v502 = vld [vmem:[%s475 + $0x58] sm:$0xff]
      %v503 = vld [vmem:[%s475 + $0x60] sm:$0xff]
      %v504 = vld [vmem:[%s475 + $0x68] sm:$0xff]
      %v505 = vld [vmem:[%s475 + $0x70] sm:$0xff]
      %v506 = vld [vmem:[%s475 + $0x78] sm:$0xff]
      %v507 = vld [vmem:[%s475 + $0x80] sm:$0xff]
      %v508 = vld [vmem:[%s475 + $0x88] sm:$0xff]
      %v509 = vld [vmem:[%s475 + $0x90] sm:$0xff]
      %v510 = vld [vmem:[%s475 + $0x98] sm:$0xff]
      %v511 = vld [vmem:[%s475 + $0xa0] sm:$0xff]
      %v512 = vld [vmem:[%s475 + $0xa8] sm:$0xff]
      %v513 = vld [vmem:[%s475 + $0xb0] sm:$0xff]
      %v514 = vld [vmem:[%s475 + $0xb8] sm:$0xff]
      %v515 = vld [vmem:[%s475 + $0xc0] sm:$0xff]
      %v516 = vld [vmem:[%s475 + $0xc8] sm:$0xff]
      %v517 = vld [vmem:[%s475 + $0xd0] sm:$0xff]
      %v518 = vld [vmem:[%s475 + $0xd8] sm:$0xff]
      %v519 = vld [vmem:[%s475 + $0xe0] sm:$0xff]
      %v520 = vld [vmem:[%s475 + $0xe8] sm:$0xff]
      %v521 = vld [vmem:[%s475 + $0xf0] sm:$0xff]
      %v522 = vld [vmem:[%s475 + $0xf8] sm:$0xff]
      %v523 = vpack.c.bf16 %v493, %v491
      %v524 = vpack.c.bf16 %v494, %v492
      %v525 = vpack.c.bf16 %v497, %v495
      %v526 = vpack.c.bf16 %v498, %v496
      %v527 = vpack.c.bf16 %v501, %v499
      %v528 = vpack.c.bf16 %v502, %v500
      %v529 = vpack.c.bf16 %v505, %v503
      %v530 = vpack.c.bf16 %v506, %v504
      %v531 = vpack.c.bf16 %v509, %v507
      %v532 = vpack.c.bf16 %v510, %v508
      %v533 = vpack.c.bf16 %v513, %v511
      %v534 = vpack.c.bf16 %v514, %v512
      %v535 = vpack.c.bf16 %v517, %v515
      %v536 = vpack.c.bf16 %v518, %v516
      %v537 = vpack.c.bf16 %v521, %v519
      %v538 = vpack.c.bf16 %v522, %v520
      %v539 = vld [vmem:[%s1] sm:$0xf]
      %v540 = vld [vmem:[%s1 + $0x4] sm:$0xf]
      %v541 = vld [vmem:[%s1 + $0x8] sm:$0xf]
      %v542 = vld [vmem:[%s1 + $0xc] sm:$0xf]
      %v543 = vld [vmem:[%s1 + $0x10] sm:$0xf]
      %v544 = vld [vmem:[%s1 + $0x14] sm:$0xf]
      %v545 = vld [vmem:[%s1 + $0x18] sm:$0xf]
      %v546 = vld [vmem:[%s1 + $0x1c] sm:$0xf]
      %v547 = vld [vmem:[%s1 + $0x20] sm:$0xf]
      %v548 = vld [vmem:[%s1 + $0x24] sm:$0xf]
      %v549 = vld [vmem:[%s1 + $0x28] sm:$0xf]
      %v550 = vld [vmem:[%s1 + $0x2c] sm:$0xf]
      %v551 = vld [vmem:[%s1 + $0x30] sm:$0xf]
      %v552 = vld [vmem:[%s1 + $0x34] sm:$0xf]
      %v553 = vld [vmem:[%s1 + $0x38] sm:$0xf]
      %v554 = vld [vmem:[%s1 + $0x3c] sm:$0xf]
      %v555 = vld [vmem:[%s1 + $0x40] sm:$0xf]
      %v556 = vld [vmem:[%s1 + $0x44] sm:$0xf]
      %v557 = vld [vmem:[%s1 + $0x48] sm:$0xf]
      %v558 = vld [vmem:[%s1 + $0x4c] sm:$0x3]
      %v559 = vld [vmem:[%s2] sm:$0x1]
      %v561 = vlaneseq
      %v562 = vshrl.u32 %v561, 7
      %v563 = vsub.s32 0, %v562
      %v564 = vrot.slane %v559, %v563
      %v586 = vunpack.c.l.b16 %v539
      %v587 = vunpack.c.l.b16 %v540
      %v588 = vunpack.c.l.b16 %v541
      %v589 = vunpack.c.l.b16 %v542
      %v590 = vunpack.c.l.b16 %v543
      %v591 = vunpack.c.l.b16 %v544
      %v592 = vunpack.c.l.b16 %v545
      %v593 = vunpack.c.l.b16 %v546
      %v594 = vunpack.c.l.b16 %v547
      %v595 = vunpack.c.l.b16 %v548
      %v596 = vunpack.c.l.b16 %v549
      %v597 = vunpack.c.l.b16 %v550
      %v598 = vunpack.c.l.b16 %v551
      %v599 = vunpack.c.l.b16 %v552
      %v600 = vunpack.c.l.b16 %v553
      %v601 = vunpack.c.l.b16 %v554
      %v602 = vunpack.c.l.b16 %v555
      %v603 = vunpack.c.l.b16 %v556
      %v604 = vunpack.c.l.b16 %v557
      %v605 = vunpack.c.l.b16 %v558
      %v606 = vpack.c.b16 %v587, %v586
      %v607 = vpack.c.b16 %v589, %v588
      %v608 = vpack.c.b16 %v591, %v590
      %v609 = vpack.c.b16 %v593, %v592
      %v610 = vpack.c.b16 %v595, %v594
      %v611 = vpack.c.b16 %v597, %v596
      %v612 = vpack.c.b16 %v599, %v598
      %v613 = vpack.c.b16 %v601, %v600
      %v614 = vpack.c.b16 %v603, %v602
      %v615 = vpack.c.b16 %v605, %v604
      %vm625 = vcmask 228352
      %v627 = vsel %vm625, %v524, 0
      %v630 = vsel %vm625, %v526, 0
      %v633 = vsel %vm625, %v528, 0
      %v636 = vsel %vm625, %v530, 0
      %v639 = vsel %vm625, %v532, 0
      %v642 = vsel %vm625, %v534, 0
      %v645 = vsel %vm625, %v536, 0
      %v648 = vsel %vm625, %v538, 0
      %vm650 = vcmask 1045504
      %v652 = vsel %vm650, %v615, 0
      %654 = vmatprep.subr.bf16.mxu0 0
      %655 = vmatpush1.bf16.msra.mxu0 %v606
      %656 = vmatprep.subr.bf16.mxu0 0
      %657 = vmatpush1.bf16.msra.mxu0 %v607
      %658 = vmatprep.subr.bf16.mxu0 0
      %659 = vmatpush1.bf16.msra.mxu0 %v608
      %660 = vmatprep.subr.bf16.mxu0 0
      %661 = vmatpush1.bf16.msra.mxu0 %v609
      %662 = vmatprep.subr.bf16.mxu0 0
      %663 = vmatpush1.bf16.msra.mxu0 %v610
      %664 = vmatprep.subr.bf16.mxu0 0
      %665 = vmatpush1.bf16.msra.mxu0 %v611
      %666 = vmatprep.subr.bf16.mxu0 0
      %667 = vmatpush1.bf16.msra.mxu0 %v612
      %668 = vmatprep.subr.bf16.mxu0 0
      %669 = vmatpush1.bf16.msra.mxu0 %v613
      %670 = vmatprep.subr.bf16.mxu0 0
      %671 = vmatpush1.bf16.msra.mxu0 %v614
      %672 = vmatprep.subr.bf16.mxu0 0
      %673 = vmatpush1.bf16.msra.mxu0 %v652
      %674 = vmatprep.subr.bf16.mxu0 0
      %675 = vmatpush1.bf16.msra.mxu0 0
      %676 = vmatprep.subr.bf16.mxu0 0
      %677 = vmatpush1.bf16.msra.mxu0 0
      %678 = vmatprep.subr.bf16.mxu0 0
      %679 = vmatpush1.bf16.msra.mxu0 0
      %680 = vmatprep.subr.bf16.mxu0 0
      %681 = vmatpush1.bf16.msra.mxu0 0
      %682 = vmatprep.subr.bf16.mxu0 0
      %683 = vmatpush1.bf16.msra.mxu0 0
      %684 = vmatprep.subr.bf16.mxu0 0
      %685 = vmatpush1.bf16.msra.mxu0 0
      %686 = vmatprep.mubr.bf16.mxu0 %v627
      %687 = vmatmul.mubr.bf16.gmra.mrb[0].mxu0 %v523
      %v688 = vpop.f32.mrb[0].mxu0
      %v689 = vadd.f32 %v564, %v688
      %v690 = vpop.f32.mrb[0].mxu0
      %v691 = vpop.f32.mrb[0].mxu0
      %v692 = vadd.f32 %v564, %v691
      %v693 = vpop.f32.mrb[0].mxu0
      %694 = vmatprep.mubr.bf16.mxu0 %v630
      %695 = vmatmul.mubr.bf16.gmra.mrb[0].mxu0 %v525
      %v696 = vpop.f32.mrb[0].mxu0
      %v697 = vadd.f32 %v564, %v696
      %v698 = vpop.f32.mrb[0].mxu0
      %v699 = vpop.f32.mrb[0].mxu0
      %v700 = vadd.f32 %v564, %v699
      %v701 = vpop.f32.mrb[0].mxu0
      %702 = vmatprep.mubr.bf16.mxu0 %v633
      %703 = vmatmul.mubr.bf16.gmra.mrb[0].mxu0 %v527
      %v704 = vpop.f32.mrb[0].mxu0
      %v705 = vadd.f32 %v564, %v704
      %v706 = vpop.f32.mrb[0].mxu0
      %v707 = vpop.f32.mrb[0].mxu0
      %v708 = vadd.f32 %v564, %v707
      %v709 = vpop.f32.mrb[0].mxu0
      %710 = vmatprep.mubr.bf16.mxu0 %v636
      %711 = vmatmul.mubr.bf16.gmra.mrb[0].mxu0 %v529
      %v712 = vpop.f32.mrb[0].mxu0
      %v713 = vadd.f32 %v564, %v712
      %v714 = vpop.f32.mrb[0].mxu0
      %v715 = vpop.f32.mrb[0].mxu0
      %v716 = vadd.f32 %v564, %v715
      %v717 = vpop.f32.mrb[0].mxu0
      %718 = vmatprep.mubr.bf16.mxu0 %v639
      %719 = vmatmul.mubr.bf16.gmra.mrb[0].mxu0 %v531
      %v720 = vpop.f32.mrb[0].mxu0
      %v721 = vadd.f32 %v564, %v720
      %v722 = vpop.f32.mrb[0].mxu0
      %v723 = vpop.f32.mrb[0].mxu0
      %v724 = vadd.f32 %v564, %v723
      %v725 = vpop.f32.mrb[0].mxu0
      %726 = vmatprep.mubr.bf16.mxu0 %v642
      %727 = vmatmul.mubr.bf16.gmra.mrb[0].mxu0 %v533
      %v728 = vpop.f32.mrb[0].mxu0
      %v729 = vadd.f32 %v564, %v728
      %v730 = vpop.f32.mrb[0].mxu0
      %v731 = vpop.f32.mrb[0].mxu0
      %v732 = vadd.f32 %v564, %v731
      %v733 = vpop.f32.mrb[0].mxu0
      %734 = vmatprep.mubr.bf16.mxu0 %v645
      %735 = vmatmul.mubr.bf16.gmra.mrb[0].mxu0 %v535
      %v736 = vpop.f32.mrb[0].mxu0
      %v737 = vadd.f32 %v564, %v736
      %v738 = vpop.f32.mrb[0].mxu0
      %v739 = vpop.f32.mrb[0].mxu0
      %v740 = vadd.f32 %v564, %v739
      %v741 = vpop.f32.mrb[0].mxu0
      %742 = vmatprep.mubr.bf16.mxu0 %v648
      %743 = vmatmul.mubr.bf16.gmra.mrb[0].mxu0 %v537
      %v744 = vpop.f32.mrb[0].mxu0
      %v745 = vadd.f32 %v564, %v744
      %v746 = vpop.f32.mrb[0].mxu0
      %v747 = vpop.f32.mrb[0].mxu0
      %v748 = vadd.f32 %v564, %v747
      %v749 = vpop.f32.mrb[0].mxu0
      %750 = vdwg.mxu0
      %v751 = vmax.f32 %v689, 0.0
      %v752 = vmax.f32 %v692, 0.0
      %v753 = vmax.f32 %v697, 0.0
      %v754 = vmax.f32 %v700, 0.0
      %v755 = vmax.f32 %v705, 0.0
      %v756 = vmax.f32 %v708, 0.0
      %v757 = vmax.f32 %v713, 0.0
      %v758 = vmax.f32 %v716, 0.0
      %v759 = vmax.f32 %v721, 0.0
      %v760 = vmax.f32 %v724, 0.0
      %v761 = vmax.f32 %v729, 0.0
      %v762 = vmax.f32 %v732, 0.0
      %v763 = vmax.f32 %v737, 0.0
      %v764 = vmax.f32 %v740, 0.0
      %v765 = vmax.f32 %v745, 0.0
      %v766 = vmax.f32 %v748, 0.0
      %v767 = vpack.c.bf16 %v752, %v751
      %v768 = vpack.c.bf16 %v754, %v753
      %v769 = vpack.c.bf16 %v756, %v755
      %v770 = vpack.c.bf16 %v758, %v757
      %v771 = vpack.c.bf16 %v760, %v759
      %v772 = vpack.c.bf16 %v762, %v761
      %v773 = vpack.c.bf16 %v764, %v763
      %v774 = vpack.c.bf16 %v766, %v765
      %v775 = vld [vmem:[%s3] sm:$0xf]
      %v776 = vld [vmem:[%s3 + $0x4] sm:$0xf]
      %v777 = vld [vmem:[%s3 + $0x8] sm:$0xf]
      %v778 = vld [vmem:[%s3 + $0xc] sm:$0x3]
      %v779 = vld [vmem:[%s4] sm:$0x1]
      %v781 = vlaneseq
      %v782 = vshrl.u32 %v781, 7
      %v783 = vsub.s32 0, %v782
      %v784 = vrot.slane %v779, %v783
      %v790 = vunpack.c.l.b16 %v775
      %v791 = vunpack.c.l.b16 %v776
      %v792 = vunpack.c.l.b16 %v777
      %v793 = vunpack.c.l.b16 %v778
      %v794 = vpack.c.b16 %v791, %v790
      %v795 = vpack.c.b16 %v793, %v792
      %vm797 = vcmask 220160
      %v799 = vsel %vm797, %v767, 0
      %v802 = vsel %vm797, %v768, 0
      %v805 = vsel %vm797, %v769, 0
      %v808 = vsel %vm797, %v770, 0
      %v811 = vsel %vm797, %v771, 0
      %v814 = vsel %vm797, %v772, 0
      %v817 = vsel %vm797, %v773, 0
      %v820 = vsel %vm797, %v774, 0
      %vm822 = vcmask 1044480
      %v823 = vsel %vm822, 4294967295, 65535
      %v824 = vsel %vm650, %v823, 0
      %v826 = vand.u32 %v795, %v824
      %828 = vmatprep.subr.bf16.mxu0 0
      %829 = vmatpush1.bf16.msra.mxu0 %v794
      %830 = vmatprep.subr.bf16.mxu0 0
      %831 = vmatpush1.bf16.msra.mxu0 %v826
      %832 = vmatprep.subr.bf16.mxu0 0
      %833 = vmatpush1.bf16.msra.mxu0 0
      %834 = vmatprep.subr.bf16.mxu0 0
      %835 = vmatpush1.bf16.msra.mxu0 0
      %836 = vmatprep.subr.bf16.mxu0 0
      %837 = vmatpush1.bf16.msra.mxu0 0
      %838 = vmatprep.subr.bf16.mxu0 0
      %839 = vmatpush1.bf16.msra.mxu0 0
      %840 = vmatprep.subr.bf16.mxu0 0
      %841 = vmatpush1.bf16.msra.mxu0 0
      %842 = vmatprep.subr.bf16.mxu0 0
      %843 = vmatpush1.bf16.msra.mxu0 0
      %844 = vmatprep.subr.bf16.mxu0 0
      %845 = vmatpush1.bf16.msra.mxu0 0
      %846 = vmatprep.subr.bf16.mxu0 0
      %847 = vmatpush1.bf16.msra.mxu0 0
      %848 = vmatprep.subr.bf16.mxu0 0
      %849 = vmatpush1.bf16.msra.mxu0 0
      %850 = vmatprep.subr.bf16.mxu0 0
      %851 = vmatpush1.bf16.msra.mxu0 0
      %852 = vmatprep.subr.bf16.mxu0 0
      %853 = vmatpush1.bf16.msra.mxu0 0
      %854 = vmatprep.subr.bf16.mxu0 0
      %855 = vmatpush1.bf16.msra.mxu0 0
      %856 = vmatprep.subr.bf16.mxu0 0
      %857 = vmatpush1.bf16.msra.mxu0 0
      %858 = vmatprep.subr.bf16.mxu0 0
      %859 = vmatpush1.bf16.msra.mxu0 0
      %860 = vmatprep.mubr.bf16.mxu0 0
      %861 = vmatmul.mubr.bf16.gmra.mrb[0].mxu0 %v799
      %v862 = vpop.f32.mrb[0].mxu0
      %v863 = vadd.f32 %v784, %v862
      %v864 = vpop.f32.mrb[0].mxu0
      %v865 = vpop.f32.mrb[0].mxu0
      %v866 = vadd.f32 %v784, %v865
      %v867 = vpop.f32.mrb[0].mxu0
      %868 = vmatprep.mubr.bf16.mxu0 0
      %869 = vmatmul.mubr.bf16.gmra.mrb[0].mxu0 %v802
      %v870 = vpop.f32.mrb[0].mxu0
      %v871 = vadd.f32 %v784, %v870
      %v872 = vpop.f32.mrb[0].mxu0
      %v873 = vpop.f32.mrb[0].mxu0
      %v874 = vadd.f32 %v784, %v873
      %v875 = vpop.f32.mrb[0].mxu0
      %876 = vmatprep.mubr.bf16.mxu0 0
      %877 = vmatmul.mubr.bf16.gmra.mrb[0].mxu0 %v805
      %v878 = vpop.f32.mrb[0].mxu0
      %v879 = vadd.f32 %v784, %v878
      %v880 = vpop.f32.mrb[0].mxu0
      %v881 = vpop.f32.mrb[0].mxu0
      %v882 = vadd.f32 %v784, %v881
      %v883 = vpop.f32.mrb[0].mxu0
      %884 = vmatprep.mubr.bf16.mxu0 0
      %885 = vmatmul.mubr.bf16.gmra.mrb[0].mxu0 %v808
      %v886 = vpop.f32.mrb[0].mxu0
      %v887 = vadd.f32 %v784, %v886
      %v888 = vpop.f32.mrb[0].mxu0
      %v889 = vpop.f32.mrb[0].mxu0
      %v890 = vadd.f32 %v784, %v889
      %v891 = vpop.f32.mrb[0].mxu0
      %892 = vmatprep.mubr.bf16.mxu0 0
      %893 = vmatmul.mubr.bf16.gmra.mrb[0].mxu0 %v811
      %v894 = vpop.f32.mrb[0].mxu0
      %v895 = vadd.f32 %v784, %v894
      %v896 = vpop.f32.mrb[0].mxu0
      %v897 = vpop.f32.mrb[0].mxu0
      %v898 = vadd.f32 %v784, %v897
      %v899 = vpop.f32.mrb[0].mxu0
      %900 = vmatprep.mubr.bf16.mxu0 0
      %901 = vmatmul.mubr.bf16.gmra.mrb[0].mxu0 %v814
      %v902 = vpop.f32.mrb[0].mxu0
      %v903 = vadd.f32 %v784, %v902
      %v904 = vpop.f32.mrb[0].mxu0
      %v905 = vpop.f32.mrb[0].mxu0
      %v906 = vadd.f32 %v784, %v905
      %v907 = vpop.f32.mrb[0].mxu0
      %908 = vmatprep.mubr.bf16.mxu0 0
      %909 = vmatmul.mubr.bf16.gmra.mrb[0].mxu0 %v817
      %v910 = vpop.f32.mrb[0].mxu0
      %v911 = vadd.f32 %v784, %v910
      %v912 = vpop.f32.mrb[0].mxu0
      %v913 = vpop.f32.mrb[0].mxu0
      %v914 = vadd.f32 %v784, %v913
      %v915 = vpop.f32.mrb[0].mxu0
      %916 = vmatprep.mubr.bf16.mxu0 0
      %917 = vmatmul.mubr.bf16.gmra.mrb[0].mxu0 %v820
      %v918 = vpop.f32.mrb[0].mxu0
      %v919 = vadd.f32 %v784, %v918
      %v920 = vpop.f32.mrb[0].mxu0
      %v921 = vpop.f32.mrb[0].mxu0
      %v922 = vadd.f32 %v784, %v921
      %v923 = vpop.f32.mrb[0].mxu0
      %924 = vdwg.mxu0
      %v925 = vmax.f32 %v863, 0.0
      %v926 = vmax.f32 %v866, 0.0
      %v927 = vmax.f32 %v871, 0.0
      %v928 = vmax.f32 %v874, 0.0
      %v929 = vmax.f32 %v879, 0.0
      %v930 = vmax.f32 %v882, 0.0
      %v931 = vmax.f32 %v887, 0.0
      %v932 = vmax.f32 %v890, 0.0
      %v933 = vmax.f32 %v895, 0.0
      %v934 = vmax.f32 %v898, 0.0
      %v935 = vmax.f32 %v903, 0.0
      %v936 = vmax.f32 %v906, 0.0
      %v937 = vmax.f32 %v911, 0.0
      %v938 = vmax.f32 %v914, 0.0
      %v939 = vmax.f32 %v919, 0.0
      %v940 = vmax.f32 %v922, 0.0
      %v941 = vpack.c.bf16 %v926, %v925
      %v942 = vpack.c.bf16 %v928, %v927
      %v943 = vpack.c.bf16 %v930, %v929
      %v944 = vpack.c.bf16 %v932, %v931
      %v945 = vpack.c.bf16 %v934, %v933
      %v946 = vpack.c.bf16 %v936, %v935
      %v947 = vpack.c.bf16 %v938, %v937
      %v948 = vpack.c.bf16 %v940, %v939
      %v949 = vld [vmem:[%s5] sm:$0xf]
      %v950 = vld [vmem:[%s5 + $0x4] sm:$0xf]
      %v951 = vld [vmem:[%s5 + $0x8] sm:$0x1]
      %v952 = vld [vmem:[%s6] sm:$0x1]
      %v954 = vlaneseq
      %v955 = vshrl.u32 %v954, 7
      %v956 = vsub.s32 0, %v955
      %v957 = vrot.slane %v952, %v956
      %v962 = vunpack.c.l.b16 %v949
      %v963 = vunpack.c.l.b16 %v950
      %v964 = vunpack.c.l.b16 %v951
      %v965 = vpack.c.b16 %v963, %v962
      %v966 = vpack.c.b16 %v964, %v964
      %vm968 = vcmask 146432
      %v970 = vsel %vm968, %v941, 0
      %v973 = vsel %vm968, %v942, 0
      %v976 = vsel %vm968, %v943, 0
      %v979 = vsel %vm968, %v944, 0
      %v982 = vsel %vm968, %v945, 0
      %v985 = vsel %vm968, %v946, 0
      %v988 = vsel %vm968, %v947, 0
      %v991 = vsel %vm968, %v948, 0
      %vm993 = vcmask 1040384
      %v995 = vsel %vm993, %v966, 0
      %997 = vmatprep.subr.bf16.mxu0 0
      %998 = vmatpush1.bf16.msra.mxu0 %v965
      %999 = vmatprep.subr.bf16.mxu0 0
      %1000 = vmatpush1.bf16.msra.mxu0 %v995
      %1001 = vmatprep.subr.bf16.mxu0 0
      %1002 = vmatpush1.bf16.msra.mxu0 0
      %1003 = vmatprep.subr.bf16.mxu0 0
      %1004 = vmatpush1.bf16.msra.mxu0 0
      %1005 = vmatprep.subr.bf16.mxu0 0
      %1006 = vmatpush1.bf16.msra.mxu0 0
      %1007 = vmatprep.subr.bf16.mxu0 0
      %1008 = vmatpush1.bf16.msra.mxu0 0
      %1009 = vmatprep.subr.bf16.mxu0 0
      %1010 = vmatpush1.bf16.msra.mxu0 0
      %1011 = vmatprep.subr.bf16.mxu0 0
      %1012 = vmatpush1.bf16.msra.mxu0 0
      %1013 = vmatprep.subr.bf16.mxu0 0
      %1014 = vmatpush1.bf16.msra.mxu0 0
      %1015 = vmatprep.subr.bf16.mxu0 0
      %1016 = vmatpush1.bf16.msra.mxu0 0
      %1017 = vmatprep.subr.bf16.mxu0 0
      %1018 = vmatpush1.bf16.msra.mxu0 0
      %1019 = vmatprep.subr.bf16.mxu0 0
      %1020 = vmatpush1.bf16.msra.mxu0 0
      %1021 = vmatprep.subr.bf16.mxu0 0
      %1022 = vmatpush1.bf16.msra.mxu0 0
      %1023 = vmatprep.subr.bf16.mxu0 0
      %1024 = vmatpush1.bf16.msra.mxu0 0
      %1025 = vmatprep.subr.bf16.mxu0 0
      %1026 = vmatpush1.bf16.msra.mxu0 0
      %1027 = vmatprep.subr.bf16.mxu0 0
      %1028 = vmatpush1.bf16.msra.mxu0 0
      %1029 = vmatprep.mubr.bf16.mxu0 0
      %1030 = vmatmul.mubr.bf16.gmra.mrb[0].mxu0 %v970
      %v1031 = vpop.f32.mrb[0].mxu0
      %v1032 = vadd.f32 %v957, %v1031
      %v1033 = vpop.f32.mrb[0].mxu0
      %v1034 = vpop.f32.mrb[0].mxu0
      %v1035 = vadd.f32 %v957, %v1034
      %v1036 = vpop.f32.mrb[0].mxu0
      %1037 = vmatprep.mubr.bf16.mxu0 0
      %1038 = vmatmul.mubr.bf16.gmra.mrb[0].mxu0 %v973
      %v1039 = vpop.f32.mrb[0].mxu0
      %v1040 = vadd.f32 %v957, %v1039
      %v1041 = vpop.f32.mrb[0].mxu0
      %v1042 = vpop.f32.mrb[0].mxu0
      %v1043 = vadd.f32 %v957, %v1042
      %v1044 = vpop.f32.mrb[0].mxu0
      %1045 = vmatprep.mubr.bf16.mxu0 0
      %1046 = vmatmul.mubr.bf16.gmra.mrb[0].mxu0 %v976
      %v1047 = vpop.f32.mrb[0].mxu0
      %v1048 = vadd.f32 %v957, %v1047
      %v1049 = vpop.f32.mrb[0].mxu0
      %v1050 = vpop.f32.mrb[0].mxu0
      %v1051 = vadd.f32 %v957, %v1050
      %v1052 = vpop.f32.mrb[0].mxu0
      %1053 = vmatprep.mubr.bf16.mxu0 0
      %1054 = vmatmul.mubr.bf16.gmra.mrb[0].mxu0 %v979
      %v1055 = vpop.f32.mrb[0].mxu0
      %v1056 = vadd.f32 %v957, %v1055
      %v1057 = vpop.f32.mrb[0].mxu0
      %v1058 = vpop.f32.mrb[0].mxu0
      %v1059 = vadd.f32 %v957, %v1058
      %v1060 = vpop.f32.mrb[0].mxu0
      %1061 = vmatprep.mubr.bf16.mxu0 0
      %1062 = vmatmul.mubr.bf16.gmra.mrb[0].mxu0 %v982
      %v1063 = vpop.f32.mrb[0].mxu0
      %v1064 = vadd.f32 %v957, %v1063
      %v1065 = vpop.f32.mrb[0].mxu0
      %v1066 = vpop.f32.mrb[0].mxu0
      %v1067 = vadd.f32 %v957, %v1066
      %v1068 = vpop.f32.mrb[0].mxu0
      %1069 = vmatprep.mubr.bf16.mxu0 0
      %1070 = vmatmul.mubr.bf16.gmra.mrb[0].mxu0 %v985
      %v1071 = vpop.f32.mrb[0].mxu0
      %v1072 = vadd.f32 %v957, %v1071
      %v1073 = vpop.f32.mrb[0].mxu0
      %v1074 = vpop.f32.mrb[0].mxu0
      %v1075 = vadd.f32 %v957, %v1074
      %v1076 = vpop.f32.mrb[0].mxu0
      %1077 = vmatprep.mubr.bf16.mxu0 0
      %1078 = vmatmul.mubr.bf16.gmra.mrb[0].mxu0 %v988
      %v1079 = vpop.f32.mrb[0].mxu0
      %v1080 = vadd.f32 %v957, %v1079
      %v1081 = vpop.f32.mrb[0].mxu0
      %v1082 = vpop.f32.mrb[0].mxu0
      %v1083 = vadd.f32 %v957, %v1082
      %v1084 = vpop.f32.mrb[0].mxu0
      %1085 = vmatprep.mubr.bf16.mxu0 0
      %1086 = vmatmul.mubr.bf16.gmra.mrb[0].mxu0 %v991
      %v1087 = vpop.f32.mrb[0].mxu0
      %v1088 = vadd.f32 %v957, %v1087
      %v1089 = vpop.f32.mrb[0].mxu0
      %v1090 = vpop.f32.mrb[0].mxu0
      %v1091 = vadd.f32 %v957, %v1090
      %v1092 = vpop.f32.mrb[0].mxu0
      %1093 = vdwg.mxu0
      %v1094 = vmax.f32 %v1032, 0.0
      %v1095 = vmax.f32 %v1035, 0.0
      %v1096 = vmax.f32 %v1040, 0.0
      %v1097 = vmax.f32 %v1043, 0.0
      %v1098 = vmax.f32 %v1048, 0.0
      %v1099 = vmax.f32 %v1051, 0.0
      %v1100 = vmax.f32 %v1056, 0.0
      %v1101 = vmax.f32 %v1059, 0.0
      %v1102 = vmax.f32 %v1064, 0.0
      %v1103 = vmax.f32 %v1067, 0.0
      %v1104 = vmax.f32 %v1072, 0.0
      %v1105 = vmax.f32 %v1075, 0.0
      %v1106 = vmax.f32 %v1080, 0.0
      %v1107 = vmax.f32 %v1083, 0.0
      %v1108 = vmax.f32 %v1088, 0.0
      %v1109 = vmax.f32 %v1091, 0.0
      %v1110 = vpack.c.bf16 %v1095, %v1094
      %v1111 = vpack.c.bf16 %v1097, %v1096
      %v1112 = vpack.c.bf16 %v1099, %v1098
      %v1113 = vpack.c.bf16 %v1101, %v1100
      %v1114 = vpack.c.bf16 %v1103, %v1102
      %v1115 = vpack.c.bf16 %v1105, %v1104
      %v1116 = vpack.c.bf16 %v1107, %v1106
      %v1117 = vpack.c.bf16 %v1109, %v1108
      %v1118 = vld [vmem:[%s7] sm:$0xf]
      %v1119 = vld [vmem:[%s7 + $0x4] sm:$0x1]
      %v1120 = vld [vmem:[%s8] sm:$0x1]
      %v1122 = vlaneseq
      %v1123 = vshrl.u32 %v1122, 7
      %v1124 = vsub.s32 0, %v1123
      %v1125 = vrot.slane %v1120, %v1124
      %v1129 = vunpack.c.l.b16 %v1118
      %v1130 = vunpack.c.l.b16 %v1119
      %v1131 = vpack.c.b16 %v1130, %v1129
      %vm1132 = vcmask 72704
      %v1134 = vsel %vm1132, %v1110, 0
      %v1137 = vsel %vm1132, %v1111, 0
      %v1140 = vsel %vm1132, %v1112, 0
      %v1143 = vsel %vm1132, %v1113, 0
      %v1146 = vsel %vm1132, %v1114, 0
      %v1149 = vsel %vm1132, %v1115, 0
      %v1152 = vsel %vm1132, %v1116, 0
      %v1155 = vsel %vm1132, %v1117, 0
      %vm1157 = vcmask 1043456
      %v1158 = vsel %vm1157, 4294967295, 65535
      %v1159 = vsel %vm822, %v1158, 0
      %v1161 = vand.u32 %v1131, %v1159
      %1163 = vmatprep.subr.bf16.mxu0 0
      %1164 = vmatpush1.bf16.msra.mxu0 %v1161
      %1165 = vmatprep.subr.bf16.mxu0 0
      %1166 = vmatpush1.bf16.msra.mxu0 0
      %1167 = vmatprep.subr.bf16.mxu0 0
      %1168 = vmatpush1.bf16.msra.mxu0 0
      %1169 = vmatprep.subr.bf16.mxu0 0
      %1170 = vmatpush1.bf16.msra.mxu0 0
      %1171 = vmatprep.subr.bf16.mxu0 0
      %1172 = vmatpush1.bf16.msra.mxu0 0
      %1173 = vmatprep.subr.bf16.mxu0 0
      %1174 = vmatpush1.bf16.msra.mxu0 0
      %1175 = vmatprep.subr.bf16.mxu0 0
      %1176 = vmatpush1.bf16.msra.mxu0 0
      %1177 = vmatprep.subr.bf16.mxu0 0
      %1178 = vmatpush1.bf16.msra.mxu0 0
      %1179 = vmatprep.subr.bf16.mxu0 0
      %1180 = vmatpush1.bf16.msra.mxu0 0
      %1181 = vmatprep.subr.bf16.mxu0 0
      %1182 = vmatpush1.bf16.msra.mxu0 0
      %1183 = vmatprep.subr.bf16.mxu0 0
      %1184 = vmatpush1.bf16.msra.mxu0 0
      %1185 = vmatprep.subr.bf16.mxu0 0
      %1186 = vmatpush1.bf16.msra.mxu0 0
      %1187 = vmatprep.subr.bf16.mxu0 0
      %1188 = vmatpush1.bf16.msra.mxu0 0
      %1189 = vmatprep.subr.bf16.mxu0 0
      %1190 = vmatpush1.bf16.msra.mxu0 0
      %1191 = vmatprep.subr.bf16.mxu0 0
      %1192 = vmatpush1.bf16.msra.mxu0 0
      %1193 = vmatprep.subr.bf16.mxu0 0
      %1194 = vmatpush1.bf16.msra.mxu0 0
      %1195 = vmatprep.mubr.bf16.mxu0 0
      %1196 = vmatmul.mubr.bf16.gmra.mrb[0].mxu0 %v1134
      %v1197 = vpop.f32.mrb[0].mxu0
      %v1198 = vadd.f32 %v1125, %v1197
      %v1199 = vpop.f32.mrb[0].mxu0
      %v1200 = vpop.f32.mrb[0].mxu0
      %v1201 = vadd.f32 %v1125, %v1200
      %v1202 = vpop.f32.mrb[0].mxu0
      %1203 = vmatprep.mubr.bf16.mxu0 0
      %1204 = vmatmul.mubr.bf16.gmra.mrb[0].mxu0 %v1137
      %v1205 = vpop.f32.mrb[0].mxu0
      %v1206 = vadd.f32 %v1125, %v1205
      %v1207 = vpop.f32.mrb[0].mxu0
      %v1208 = vpop.f32.mrb[0].mxu0
      %v1209 = vadd.f32 %v1125, %v1208
      %v1210 = vpop.f32.mrb[0].mxu0
      %1211 = vmatprep.mubr.bf16.mxu0 0
      %1212 = vmatmul.mubr.bf16.gmra.mrb[0].mxu0 %v1140
      %v1213 = vpop.f32.mrb[0].mxu0
      %v1214 = vadd.f32 %v1125, %v1213
      %v1215 = vpop.f32.mrb[0].mxu0
      %v1216 = vpop.f32.mrb[0].mxu0
      %v1217 = vadd.f32 %v1125, %v1216
      %v1218 = vpop.f32.mrb[0].mxu0
      %1219 = vmatprep.mubr.bf16.mxu0 0
      %1220 = vmatmul.mubr.bf16.gmra.mrb[0].mxu0 %v1143
      %v1221 = vpop.f32.mrb[0].mxu0
      %v1222 = vadd.f32 %v1125, %v1221
      %v1223 = vpop.f32.mrb[0].mxu0
      %v1224 = vpop.f32.mrb[0].mxu0
      %v1225 = vadd.f32 %v1125, %v1224
      %v1226 = vpop.f32.mrb[0].mxu0
      %1227 = vmatprep.mubr.bf16.mxu0 0
      %1228 = vmatmul.mubr.bf16.gmra.mrb[0].mxu0 %v1146
      %v1229 = vpop.f32.mrb[0].mxu0
      %v1230 = vadd.f32 %v1125, %v1229
      %v1231 = vpop.f32.mrb[0].mxu0
      %v1232 = vpop.f32.mrb[0].mxu0
      %v1233 = vadd.f32 %v1125, %v1232
      %v1234 = vpop.f32.mrb[0].mxu0
      %1235 = vmatprep.mubr.bf16.mxu0 0
      %1236 = vmatmul.mubr.bf16.gmra.mrb[0].mxu0 %v1149
      %v1237 = vpop.f32.mrb[0].mxu0
      %v1238 = vadd.f32 %v1125, %v1237
      %v1239 = vpop.f32.mrb[0].mxu0
      %v1240 = vpop.f32.mrb[0].mxu0
      %v1241 = vadd.f32 %v1125, %v1240
      %v1242 = vpop.f32.mrb[0].mxu0
      %1243 = vmatprep.mubr.bf16.mxu0 0
      %1244 = vmatmul.mubr.bf16.gmra.mrb[0].mxu0 %v1152
      %v1245 = vpop.f32.mrb[0].mxu0
      %v1246 = vadd.f32 %v1125, %v1245
      %v1247 = vpop.f32.mrb[0].mxu0
      %v1248 = vpop.f32.mrb[0].mxu0
      %v1249 = vadd.f32 %v1125, %v1248
      %v1250 = vpop.f32.mrb[0].mxu0
      %1251 = vmatprep.mubr.bf16.mxu0 0
      %1252 = vmatmul.mubr.bf16.gmra.mrb[0].mxu0 %v1155
      %v1253 = vpop.f32.mrb[0].mxu0
      %v1254 = vadd.f32 %v1125, %v1253
      %v1255 = vpop.f32.mrb[0].mxu0
      %v1256 = vpop.f32.mrb[0].mxu0
      %v1257 = vadd.f32 %v1125, %v1256
      %v1258 = vpop.f32.mrb[0].mxu0
      %1259 = vdwg.mxu0
      %v1260 = vmax.f32 %v1198, 0.0
      %v1261 = vmax.f32 %v1201, 0.0
      %v1262 = vmax.f32 %v1206, 0.0
      %v1263 = vmax.f32 %v1209, 0.0
      %v1264 = vmax.f32 %v1214, 0.0
      %v1265 = vmax.f32 %v1217, 0.0
      %v1266 = vmax.f32 %v1222, 0.0
      %v1267 = vmax.f32 %v1225, 0.0
      %v1268 = vmax.f32 %v1230, 0.0
      %v1269 = vmax.f32 %v1233, 0.0
      %v1270 = vmax.f32 %v1238, 0.0
      %v1271 = vmax.f32 %v1241, 0.0
      %v1272 = vmax.f32 %v1246, 0.0
      %v1273 = vmax.f32 %v1249, 0.0
      %v1274 = vmax.f32 %v1254, 0.0
      %v1275 = vmax.f32 %v1257, 0.0
      %v1276 = vld [vmem:[%s9] sm:$0x1]
      %v1278 = vlaneseq
      %v1279 = vshrl.u32 %v1278, 7
      %v1280 = vsub.s32 0, %v1279
      %v1281 = vrot.slane %v1276, %v1280
      %v1283 = vmul.f32 %v1260, %v1281
      %v1284 = vmul.f32 %v1261, %v1281
      %v1285 = vmul.f32 %v1262, %v1281
      %v1286 = vmul.f32 %v1263, %v1281
      %v1287 = vmul.f32 %v1264, %v1281
      %v1288 = vmul.f32 %v1265, %v1281
      %v1289 = vmul.f32 %v1266, %v1281
      %v1290 = vmul.f32 %v1267, %v1281
      %v1291 = vmul.f32 %v1268, %v1281
      %v1292 = vmul.f32 %v1269, %v1281
      %v1293 = vmul.f32 %v1270, %v1281
      %v1294 = vmul.f32 %v1271, %v1281
      %v1295 = vmul.f32 %v1272, %v1281
      %v1296 = vmul.f32 %v1273, %v1281
      %v1297 = vmul.f32 %v1274, %v1281
      %v1298 = vmul.f32 %v1275, %v1281
      %v1299 = vld [vmem:[%s10] sm:$0x1]
      %v1301 = vlaneseq
      %v1302 = vshrl.u32 %v1301, 7
      %v1303 = vsub.s32 0, %v1302
      %v1304 = vrot.slane %v1299, %v1303
      %v1306 = vadd.f32 %v1283, %v1304
      %v1307 = vadd.f32 %v1284, %v1304
      %v1308 = vadd.f32 %v1285, %v1304
      %v1309 = vadd.f32 %v1286, %v1304
      %v1310 = vadd.f32 %v1287, %v1304
      %v1311 = vadd.f32 %v1288, %v1304
      %v1312 = vadd.f32 %v1289, %v1304
      %v1313 = vadd.f32 %v1290, %v1304
      %v1314 = vadd.f32 %v1291, %v1304
      %v1315 = vadd.f32 %v1292, %v1304
      %v1316 = vadd.f32 %v1293, %v1304
      %v1317 = vadd.f32 %v1294, %v1304
      %v1318 = vadd.f32 %v1295, %v1304
      %v1319 = vadd.f32 %v1296, %v1304
      %v1320 = vadd.f32 %v1297, %v1304
      %v1321 = vadd.f32 %v1298, %v1304
      %v1322 = vmin.f32 %v1306, 5.0
      %v1323 = vmin.f32 %v1307, 5.0
      %v1324 = vmin.f32 %v1308, 5.0
      %v1325 = vmin.f32 %v1309, 5.0
      %v1326 = vmin.f32 %v1310, 5.0
      %v1327 = vmin.f32 %v1311, 5.0
      %v1328 = vmin.f32 %v1312, 5.0
      %v1329 = vmin.f32 %v1313, 5.0
      %v1330 = vmin.f32 %v1314, 5.0
      %v1331 = vmin.f32 %v1315, 5.0
      %v1332 = vmin.f32 %v1316, 5.0
      %v1333 = vmin.f32 %v1317, 5.0
      %v1334 = vmin.f32 %v1318, 5.0
      %v1335 = vmin.f32 %v1319, 5.0
      %v1336 = vmin.f32 %v1320, 5.0
      %v1337 = vmin.f32 %v1321, 5.0
      %vm1338 = vcmp.gt.f32.partialorder %v1306, 5.0
      %vm1339 = vcmp.gt.f32.partialorder %v1307, 5.0
      %vm1340 = vcmp.gt.f32.partialorder %v1308, 5.0
      %vm1341 = vcmp.gt.f32.partialorder %v1309, 5.0
      %vm1342 = vcmp.gt.f32.partialorder %v1310, 5.0
      %vm1343 = vcmp.gt.f32.partialorder %v1311, 5.0
      %vm1344 = vcmp.gt.f32.partialorder %v1312, 5.0
      %vm1345 = vcmp.gt.f32.partialorder %v1313, 5.0
      %vm1346 = vcmp.gt.f32.partialorder %v1314, 5.0
      %vm1347 = vcmp.gt.f32.partialorder %v1315, 5.0
      %vm1348 = vcmp.gt.f32.partialorder %v1316, 5.0
      %vm1349 = vcmp.gt.f32.partialorder %v1317, 5.0
      %vm1350 = vcmp.gt.f32.partialorder %v1318, 5.0
      %vm1351 = vcmp.gt.f32.partialorder %v1319, 5.0
      %vm1352 = vcmp.gt.f32.partialorder %v1320, 5.0
      %vm1353 = vcmp.gt.f32.partialorder %v1321, 5.0
      %v1354 = vmul.f32 %v1322, 1.442695
      %v1355 = vpow.pop %v1354
      %v1356 = vmul.f32 %v1323, 1.442695
      %v1357 = vpow.pop %v1356
      %v1358 = vmul.f32 %v1324, 1.442695
      %v1359 = vpow.pop %v1358
      %v1360 = vmul.f32 %v1325, 1.442695
      %v1361 = vpow.pop %v1360
      %v1362 = vmul.f32 %v1326, 1.442695
      %v1363 = vpow.pop %v1362
      %v1364 = vmul.f32 %v1327, 1.442695
      %v1365 = vpow.pop %v1364
      %v1366 = vmul.f32 %v1328, 1.442695
      %v1367 = vpow.pop %v1366
      %v1368 = vmul.f32 %v1329, 1.442695
      %v1369 = vpow.pop %v1368
      %v1370 = vmul.f32 %v1330, 1.442695
      %v1371 = vpow.pop %v1370
      %v1372 = vmul.f32 %v1331, 1.442695
      %v1373 = vpow.pop %v1372
      %v1374 = vmul.f32 %v1332, 1.442695
      %v1375 = vpow.pop %v1374
      %v1376 = vmul.f32 %v1333, 1.442695
      %v1377 = vpow.pop %v1376
      %v1378 = vmul.f32 %v1334, 1.442695
      %v1379 = vpow.pop %v1378
      %v1380 = vmul.f32 %v1335, 1.442695
      %v1381 = vpow.pop %v1380
      %v1382 = vmul.f32 %v1336, 1.442695
      %v1383 = vpow.pop %v1382
      %v1384 = vmul.f32 %v1337, 1.442695
      %v1385 = vpow.pop %v1384
      %v1386 = vadd.f32 %v1355, 1.0
      %v1387 = vlog2.pop %v1386
      %v1388 = vmul.f32 %v1387, 0.6931472
      %v1389 = vmul.f32 -0.5, %v1355
      %v1390 = vadd.f32 %v1389, 1.0
      %v1391 = vmul.f32 %v1390, %v1355
      %v1392 = vand.u32 2147483647, %v1355
      %vm1393 = vcmp.lt.f32.partialorder %v1392, 0.0004427343
      %v1394 = vsel %vm1393, %v1391, %v1388
      %v1395 = vadd.f32 %v1357, 1.0
      %v1396 = vlog2.pop %v1395
      %v1397 = vmul.f32 %v1396, 0.6931472
      %v1398 = vmul.f32 -0.5, %v1357
      %v1399 = vadd.f32 %v1398, 1.0
      %v1400 = vmul.f32 %v1399, %v1357
      %v1401 = vand.u32 2147483647, %v1357
      %vm1402 = vcmp.lt.f32.partialorder %v1401, 0.0004427343
      %v1403 = vsel %vm1402, %v1400, %v1397
      %v1404 = vadd.f32 %v1359, 1.0
      %v1405 = vlog2.pop %v1404
      %v1406 = vmul.f32 %v1405, 0.6931472
      %v1407 = vmul.f32 -0.5, %v1359
      %v1408 = vadd.f32 %v1407, 1.0
      %v1409 = vmul.f32 %v1408, %v1359
      %v1410 = vand.u32 2147483647, %v1359
      %vm1411 = vcmp.lt.f32.partialorder %v1410, 0.0004427343
      %v1412 = vsel %vm1411, %v1409, %v1406
      %v1413 = vadd.f32 %v1361, 1.0
      %v1414 = vlog2.pop %v1413
      %v1415 = vmul.f32 %v1414, 0.6931472
      %v1416 = vmul.f32 -0.5, %v1361
      %v1417 = vadd.f32 %v1416, 1.0
      %v1418 = vmul.f32 %v1417, %v1361
      %v1419 = vand.u32 2147483647, %v1361
      %vm1420 = vcmp.lt.f32.partialorder %v1419, 0.0004427343
      %v1421 = vsel %vm1420, %v1418, %v1415
      %v1422 = vadd.f32 %v1363, 1.0
      %v1423 = vlog2.pop %v1422
      %v1424 = vmul.f32 %v1423, 0.6931472
      %v1425 = vmul.f32 -0.5, %v1363
      %v1426 = vadd.f32 %v1425, 1.0
      %v1427 = vmul.f32 %v1426, %v1363
      %v1428 = vand.u32 2147483647, %v1363
      %vm1429 = vcmp.lt.f32.partialorder %v1428, 0.0004427343
      %v1430 = vsel %vm1429, %v1427, %v1424
      %v1431 = vadd.f32 %v1365, 1.0
      %v1432 = vlog2.pop %v1431
      %v1433 = vmul.f32 %v1432, 0.6931472
      %v1434 = vmul.f32 -0.5, %v1365
      %v1435 = vadd.f32 %v1434, 1.0
      %v1436 = vmul.f32 %v1435, %v1365
      %v1437 = vand.u32 2147483647, %v1365
      %vm1438 = vcmp.lt.f32.partialorder %v1437, 0.0004427343
      %v1439 = vsel %vm1438, %v1436, %v1433
      %v1440 = vadd.f32 %v1367, 1.0
      %v1441 = vlog2.pop %v1440
      %v1442 = vmul.f32 %v1441, 0.6931472
      %v1443 = vmul.f32 -0.5, %v1367
      %v1444 = vadd.f32 %v1443, 1.0
      %v1445 = vmul.f32 %v1444, %v1367
      %v1446 = vand.u32 2147483647, %v1367
      %vm1447 = vcmp.lt.f32.partialorder %v1446, 0.0004427343
      %v1448 = vsel %vm1447, %v1445, %v1442
      %v1449 = vadd.f32 %v1369, 1.0
      %v1450 = vlog2.pop %v1449
      %v1451 = vmul.f32 %v1450, 0.6931472
      %v1452 = vmul.f32 -0.5, %v1369
      %v1453 = vadd.f32 %v1452, 1.0
      %v1454 = vmul.f32 %v1453, %v1369
      %v1455 = vand.u32 2147483647, %v1369
      %vm1456 = vcmp.lt.f32.partialorder %v1455, 0.0004427343
      %v1457 = vsel %vm1456, %v1454, %v1451
      %v1458 = vadd.f32 %v1371, 1.0
      %v1459 = vlog2.pop %v1458
      %v1460 = vmul.f32 %v1459, 0.6931472
      %v1461 = vmul.f32 -0.5, %v1371
      %v1462 = vadd.f32 %v1461, 1.0
      %v1463 = vmul.f32 %v1462, %v1371
      %v1464 = vand.u32 2147483647, %v1371
      %vm1465 = vcmp.lt.f32.partialorder %v1464, 0.0004427343
      %v1466 = vsel %vm1465, %v1463, %v1460
      %v1467 = vadd.f32 %v1373, 1.0
      %v1468 = vlog2.pop %v1467
      %v1469 = vmul.f32 %v1468, 0.6931472
      %v1470 = vmul.f32 -0.5, %v1373
      %v1471 = vadd.f32 %v1470, 1.0
      %v1472 = vmul.f32 %v1471, %v1373
      %v1473 = vand.u32 2147483647, %v1373
      %vm1474 = vcmp.lt.f32.partialorder %v1473, 0.0004427343
      %v1475 = vsel %vm1474, %v1472, %v1469
      %v1476 = vadd.f32 %v1375, 1.0
      %v1477 = vlog2.pop %v1476
      %v1478 = vmul.f32 %v1477, 0.6931472
      %v1479 = vmul.f32 -0.5, %v1375
      %v1480 = vadd.f32 %v1479, 1.0
      %v1481 = vmul.f32 %v1480, %v1375
      %v1482 = vand.u32 2147483647, %v1375
      %vm1483 = vcmp.lt.f32.partialorder %v1482, 0.0004427343
      %v1484 = vsel %vm1483, %v1481, %v1478
      %v1485 = vadd.f32 %v1377, 1.0
      %v1486 = vlog2.pop %v1485
      %v1487 = vmul.f32 %v1486, 0.6931472
      %v1488 = vmul.f32 -0.5, %v1377
      %v1489 = vadd.f32 %v1488, 1.0
      %v1490 = vmul.f32 %v1489, %v1377
      %v1491 = vand.u32 2147483647, %v1377
      %vm1492 = vcmp.lt.f32.partialorder %v1491, 0.0004427343
      %v1493 = vsel %vm1492, %v1490, %v1487
      %v1494 = vadd.f32 %v1379, 1.0
      %v1495 = vlog2.pop %v1494
      %v1496 = vmul.f32 %v1495, 0.6931472
      %v1497 = vmul.f32 -0.5, %v1379
      %v1498 = vadd.f32 %v1497, 1.0
      %v1499 = vmul.f32 %v1498, %v1379
      %v1500 = vand.u32 2147483647, %v1379
      %vm1501 = vcmp.lt.f32.partialorder %v1500, 0.0004427343
      %v1502 = vsel %vm1501, %v1499, %v1496
      %v1503 = vadd.f32 %v1381, 1.0
      %v1504 = vlog2.pop %v1503
      %v1505 = vmul.f32 %v1504, 0.6931472
      %v1506 = vmul.f32 -0.5, %v1381
      %v1507 = vadd.f32 %v1506, 1.0
      %v1508 = vmul.f32 %v1507, %v1381
      %v1509 = vand.u32 2147483647, %v1381
      %vm1510 = vcmp.lt.f32.partialorder %v1509, 0.0004427343
      %v1511 = vsel %vm1510, %v1508, %v1505
      %v1512 = vadd.f32 %v1383, 1.0
      %v1513 = vlog2.pop %v1512
      %v1514 = vmul.f32 %v1513, 0.6931472
      %v1515 = vmul.f32 -0.5, %v1383
      %v1516 = vadd.f32 %v1515, 1.0
      %v1517 = vmul.f32 %v1516, %v1383
      %v1518 = vand.u32 2147483647, %v1383
      %vm1519 = vcmp.lt.f32.partialorder %v1518, 0.0004427343
      %v1520 = vsel %vm1519, %v1517, %v1514
      %v1521 = vadd.f32 %v1385, 1.0
      %v1522 = vlog2.pop %v1521
      %v1523 = vmul.f32 %v1522, 0.6931472
      %v1524 = vmul.f32 -0.5, %v1385
      %v1525 = vadd.f32 %v1524, 1.0
      %v1526 = vmul.f32 %v1525, %v1385
      %v1527 = vand.u32 2147483647, %v1385
      %vm1528 = vcmp.lt.f32.partialorder %v1527, 0.0004427343
      %v1529 = vsel %vm1528, %v1526, %v1523
      %v1530 = vsel %vm1338, %v1306, %v1394
      %v1531 = vsel %vm1339, %v1307, %v1403
      %v1532 = vsel %vm1340, %v1308, %v1412
      %v1533 = vsel %vm1341, %v1309, %v1421
      %v1534 = vsel %vm1342, %v1310, %v1430
      %v1535 = vsel %vm1343, %v1311, %v1439
      %v1536 = vsel %vm1344, %v1312, %v1448
      %v1537 = vsel %vm1345, %v1313, %v1457
      %v1538 = vsel %vm1346, %v1314, %v1466
      %v1539 = vsel %vm1347, %v1315, %v1475
      %v1540 = vsel %vm1348, %v1316, %v1484
      %v1541 = vsel %vm1349, %v1317, %v1493
      %v1542 = vsel %vm1350, %v1318, %v1502
      %v1543 = vsel %vm1351, %v1319, %v1511
      %v1544 = vsel %vm1352, %v1320, %v1520
      %v1545 = vsel %vm1353, %v1321, %v1529
      %vm1546 = vcmask 23552
      %v1547 = vsel %vm1546, %v1530, 0.0
      %1548 = vadd.xlane.f32.xlu0 %v1547
      %v1549 = vpop.xlane.xlu0 %1548
      %v1550 = vsel %vm1546, %v1531, 0.0
      %1551 = vadd.xlane.f32.xlu0 %v1550
      %v1552 = vpop.xlane.xlu0 %1551
      %v1553 = vsel %vm1546, %v1532, 0.0
      %1554 = vadd.xlane.f32.xlu0 %v1553
      %v1555 = vpop.xlane.xlu0 %1554
      %v1556 = vsel %vm1546, %v1533, 0.0
      %1557 = vadd.xlane.f32.xlu0 %v1556
      %v1558 = vpop.xlane.xlu0 %1557
      %v1559 = vsel %vm1546, %v1534, 0.0
      %1560 = vadd.xlane.f32.xlu0 %v1559
      %v1561 = vpop.xlane.xlu0 %1560
      %v1562 = vsel %vm1546, %v1535, 0.0
      %1563 = vadd.xlane.f32.xlu0 %v1562
      %v1564 = vpop.xlane.xlu0 %1563
      %v1565 = vsel %vm1546, %v1536, 0.0
      %1566 = vadd.xlane.f32.xlu0 %v1565
      %v1567 = vpop.xlane.xlu0 %1566
      %v1568 = vsel %vm1546, %v1537, 0.0
      %1569 = vadd.xlane.f32.xlu0 %v1568
      %v1570 = vpop.xlane.xlu0 %1569
      %v1571 = vsel %vm1546, %v1538, 0.0
      %1572 = vadd.xlane.f32.xlu0 %v1571
      %v1573 = vpop.xlane.xlu0 %1572
      %v1574 = vsel %vm1546, %v1539, 0.0
      %1575 = vadd.xlane.f32.xlu0 %v1574
      %v1576 = vpop.xlane.xlu0 %1575
      %v1577 = vsel %vm1546, %v1540, 0.0
      %1578 = vadd.xlane.f32.xlu0 %v1577
      %v1579 = vpop.xlane.xlu0 %1578
      %v1580 = vsel %vm1546, %v1541, 0.0
      %1581 = vadd.xlane.f32.xlu0 %v1580
      %v1582 = vpop.xlane.xlu0 %1581
      %v1583 = vsel %vm1546, %v1542, 0.0
      %1584 = vadd.xlane.f32.xlu0 %v1583
      %v1585 = vpop.xlane.xlu0 %1584
      %v1586 = vsel %vm1546, %v1543, 0.0
      %1587 = vadd.xlane.f32.xlu0 %v1586
      %v1588 = vpop.xlane.xlu0 %1587
      %v1589 = vsel %vm1546, %v1544, 0.0
      %1590 = vadd.xlane.f32.xlu0 %v1589
      %v1591 = vpop.xlane.xlu0 %1590
      %v1592 = vsel %vm1546, %v1545, 0.0
      %1593 = vadd.xlane.f32.xlu0 %v1592
      %v1594 = vpop.xlane.xlu0 %1593
      %v1595 = vrcp.pop %v1549
      %v1596 = vrcp.pop %v1552
      %v1597 = vrcp.pop %v1555
      %v1598 = vrcp.pop %v1558
      %v1599 = vrcp.pop %v1561
      %v1600 = vrcp.pop %v1564
      %v1601 = vrcp.pop %v1567
      %v1602 = vrcp.pop %v1570
      %v1603 = vrcp.pop %v1573
      %v1604 = vrcp.pop %v1576
      %v1605 = vrcp.pop %v1579
      %v1606 = vrcp.pop %v1582
      %v1607 = vrcp.pop %v1585
      %v1608 = vrcp.pop %v1588
      %v1609 = vrcp.pop %v1591
      %v1610 = vrcp.pop %v1594
      %v1611 = vmul.f32 %v1530, %v1595
      %v1612 = vmul.f32 %v1531, %v1596
      %v1613 = vmul.f32 %v1532, %v1597
      %v1614 = vmul.f32 %v1533, %v1598
      %v1615 = vmul.f32 %v1534, %v1599
      %v1616 = vmul.f32 %v1535, %v1600
      %v1617 = vmul.f32 %v1536, %v1601
      %v1618 = vmul.f32 %v1537, %v1602
      %v1619 = vmul.f32 %v1538, %v1603
      %v1620 = vmul.f32 %v1539, %v1604
      %v1621 = vmul.f32 %v1540, %v1605
      %v1622 = vmul.f32 %v1541, %v1606
      %v1623 = vmul.f32 %v1542, %v1607
      %v1624 = vmul.f32 %v1543, %v1608
      %v1625 = vmul.f32 %v1544, %v1609
      %v1626 = vmul.f32 %v1545, %v1610
      %1627 = vst.msk [vmem:[%s481] sm:$0xff] %vm1546, %v1611
      %1628 = vst.msk [vmem:[%s481 + $0x8] sm:$0xff] %vm1546, %v1612
      %1629 = vst.msk [vmem:[%s481 + $0x10] sm:$0xff] %vm1546, %v1613
      %1630 = vst.msk [vmem:[%s481 + $0x18] sm:$0xff] %vm1546, %v1614
      %1631 = vst.msk [vmem:[%s481 + $0x20] sm:$0xff] %vm1546, %v1615
      %1632 = vst.msk [vmem:[%s481 + $0x28] sm:$0xff] %vm1546, %v1616
      %1633 = vst.msk [vmem:[%s481 + $0x30] sm:$0xff] %vm1546, %v1617
      %1634 = vst.msk [vmem:[%s481 + $0x38] sm:$0xff] %vm1546, %v1618
      %1635 = vst.msk [vmem:[%s481 + $0x40] sm:$0xff] %vm1546, %v1619
      %1636 = vst.msk [vmem:[%s481 + $0x48] sm:$0xff] %vm1546, %v1620
      %1637 = vst.msk [vmem:[%s481 + $0x50] sm:$0xff] %vm1546, %v1621
      %1638 = vst.msk [vmem:[%s481 + $0x58] sm:$0xff] %vm1546, %v1622
      %1639 = vst.msk [vmem:[%s481 + $0x60] sm:$0xff] %vm1546, %v1623
      %1640 = vst.msk [vmem:[%s481 + $0x68] sm:$0xff] %vm1546, %v1624
      %1641 = vst.msk [vmem:[%s481 + $0x70] sm:$0xff] %vm1546, %v1625
      %1642 = vst.msk [vmem:[%s481 + $0x78] sm:$0xff] %vm1546, %v1626
      %v1643 = vpack.c.bf16 %v1612, %v1611
      %v1644 = vpack.c.bf16 %v1614, %v1613
      %v1645 = vpack.c.bf16 %v1616, %v1615
      %v1646 = vpack.c.bf16 %v1618, %v1617
      %v1647 = vpack.c.bf16 %v1620, %v1619
      %v1648 = vpack.c.bf16 %v1622, %v1621
      %v1649 = vpack.c.bf16 %v1624, %v1623
      %v1650 = vpack.c.bf16 %v1626, %v1625
      %v1651 = vld [vmem:[%s11] sm:$0xf]
      %v1652 = vld [vmem:[%s12] sm:$0x3]
      %v1654 = vlaneseq
      %v1655 = vshrl.u32 %v1654, 7
      %v1656 = vsub.s32 0, %v1655
      %v1657 = vrot.slane %v1652, %v1656
      %v1658 = vlaneseq
      %v1659 = vshrl.u32 %v1658, 7
      %v1660 = vsub.s32 1, %v1659
      %v1661 = vrot.slane %v1652, %v1660
      %v1666 = vunpack.c.l.s4 1983009808
      %v1667 = vunpack.c.0.s8 %v1666
      %v1668 = vlaneseq
      %v1669 = vshrl.u32 %v1668, 7
      %v1670 = vsub.s32 %v1667, %v1669
      %v1671 = vrot.slane %v1651, %v1670
      %v1672 = vcombine.high %v1671, %v1671
      %v1674 = vsel %vm1546, %v1643, 0
      %v1677 = vsel %vm1546, %v1644, 0
      %v1680 = vsel %vm1546, %v1645, 0
      %v1683 = vsel %vm1546, %v1646, 0
      %v1686 = vsel %vm1546, %v1647, 0
      %v1689 = vsel %vm1546, %v1648, 0
      %v1692 = vsel %vm1546, %v1649, 0
      %v1695 = vsel %vm1546, %v1650, 0
      %vm1697 = vcmask 1041408
      %v1698 = vsel %vm993, 4294967295, 65535
      %v1699 = vsel %vm1697, %v1698, 0
      %v1701 = vand.u32 %v1671, %v1699
      %v1704 = vand.u32 %v1672, %v1699
      %1706 = vmatprep.subr.bf16.mxu0 %v1704
      %1707 = vmatpush1.bf16.msra.mxu0 %v1701
      %1708 = vmatprep.subr.bf16.mxu0 0
      %1709 = vmatpush1.bf16.msra.mxu0 0
      %1710 = vmatprep.subr.bf16.mxu0 0
      %1711 = vmatpush1.bf16.msra.mxu0 0
      %1712 = vmatprep.subr.bf16.mxu0 0
      %1713 = vmatpush1.bf16.msra.mxu0 0
      %1714 = vmatprep.subr.bf16.mxu0 0
      %1715 = vmatpush1.bf16.msra.mxu0 0
      %1716 = vmatprep.subr.bf16.mxu0 0
      %1717 = vmatpush1.bf16.msra.mxu0 0
      %1718 = vmatprep.subr.bf16.mxu0 0
      %1719 = vmatpush1.bf16.msra.mxu0 0
      %1720 = vmatprep.subr.bf16.mxu0 0
      %1721 = vmatpush1.bf16.msra.mxu0 0
      %1722 = vmatprep.subr.bf16.mxu0 0
      %1723 = vmatpush1.bf16.msra.mxu0 0
      %1724 = vmatprep.subr.bf16.mxu0 0
      %1725 = vmatpush1.bf16.msra.mxu0 0
      %1726 = vmatprep.subr.bf16.mxu0 0
      %1727 = vmatpush1.bf16.msra.mxu0 0
      %1728 = vmatprep.subr.bf16.mxu0 0
      %1729 = vmatpush1.bf16.msra.mxu0 0
      %1730 = vmatprep.subr.bf16.mxu0 0
      %1731 = vmatpush1.bf16.msra.mxu0 0
      %1732 = vmatprep.subr.bf16.mxu0 0
      %1733 = vmatpush1.bf16.msra.mxu0 0
      %1734 = vmatprep.subr.bf16.mxu0 0
      %1735 = vmatpush1.bf16.msra.mxu0 0
      %1736 = vmatprep.subr.bf16.mxu0 0
      %1737 = vmatpush1.bf16.msra.mxu0 0
      %1738 = vmatprep.mubr.bf16.mxu0 0
      %1739 = vmatmul.mubr.bf16.gmra.mrb[0].mxu0 %v1674
      %v1740 = vpop.f32.mrb[0].mxu0
      %v1741 = vadd.f32 %v1657, %v1740
      %v1742 = vpop.f32.mrb[0].mxu0
      %v1743 = vadd.f32 %v1661, %v1742
      %v1744 = vpop.f32.mrb[0].mxu0
      %v1745 = vadd.f32 %v1657, %v1744
      %v1746 = vpop.f32.mrb[0].mxu0
      %v1747 = vadd.f32 %v1661, %v1746
      %1748 = vmatprep.mubr.bf16.mxu0 0
      %1749 = vmatmul.mubr.bf16.gmra.mrb[0].mxu0 %v1677
      %v1750 = vpop.f32.mrb[0].mxu0
      %v1751 = vadd.f32 %v1657, %v1750
      %v1752 = vpop.f32.mrb[0].mxu0
      %v1753 = vadd.f32 %v1661, %v1752
      %v1754 = vpop.f32.mrb[0].mxu0
      %v1755 = vadd.f32 %v1657, %v1754
      %v1756 = vpop.f32.mrb[0].mxu0
      %v1757 = vadd.f32 %v1661, %v1756
      %1758 = vmatprep.mubr.bf16.mxu0 0
      %1759 = vmatmul.mubr.bf16.gmra.mrb[0].mxu0 %v1680
      %v1760 = vpop.f32.mrb[0].mxu0
      %v1761 = vadd.f32 %v1657, %v1760
      %v1762 = vpop.f32.mrb[0].mxu0
      %v1763 = vadd.f32 %v1661, %v1762
      %v1764 = vpop.f32.mrb[0].mxu0
      %v1765 = vadd.f32 %v1657, %v1764
      %v1766 = vpop.f32.mrb[0].mxu0
      %v1767 = vadd.f32 %v1661, %v1766
      %1768 = vmatprep.mubr.bf16.mxu0 0
      %1769 = vmatmul.mubr.bf16.gmra.mrb[0].mxu0 %v1683
      %v1770 = vpop.f32.mrb[0].mxu0
      %v1771 = vadd.f32 %v1657, %v1770
      %v1772 = vpop.f32.mrb[0].mxu0
      %v1773 = vadd.f32 %v1661, %v1772
      %v1774 = vpop.f32.mrb[0].mxu0
      %v1775 = vadd.f32 %v1657, %v1774
      %v1776 = vpop.f32.mrb[0].mxu0
      %v1777 = vadd.f32 %v1661, %v1776
      %1778 = vmatprep.mubr.bf16.mxu0 0
      %1779 = vmatmul.mubr.bf16.gmra.mrb[0].mxu0 %v1686
      %v1780 = vpop.f32.mrb[0].mxu0
      %v1781 = vadd.f32 %v1657, %v1780
      %v1782 = vpop.f32.mrb[0].mxu0
      %v1783 = vadd.f32 %v1661, %v1782
      %v1784 = vpop.f32.mrb[0].mxu0
      %v1785 = vadd.f32 %v1657, %v1784
      %v1786 = vpop.f32.mrb[0].mxu0
      %v1787 = vadd.f32 %v1661, %v1786
      %1788 = vmatprep.mubr.bf16.mxu0 0
      %1789 = vmatmul.mubr.bf16.gmra.mrb[0].mxu0 %v1689
      %v1790 = vpop.f32.mrb[0].mxu0
      %v1791 = vadd.f32 %v1657, %v1790
      %v1792 = vpop.f32.mrb[0].mxu0
      %v1793 = vadd.f32 %v1661, %v1792
      %v1794 = vpop.f32.mrb[0].mxu0
      %v1795 = vadd.f32 %v1657, %v1794
      %v1796 = vpop.f32.mrb[0].mxu0
      %v1797 = vadd.f32 %v1661, %v1796
      %1798 = vmatprep.mubr.bf16.mxu0 0
      %1799 = vmatmul.mubr.bf16.gmra.mrb[0].mxu0 %v1692
      %v1800 = vpop.f32.mrb[0].mxu0
      %v1801 = vadd.f32 %v1657, %v1800
      %v1802 = vpop.f32.mrb[0].mxu0
      %v1803 = vadd.f32 %v1661, %v1802
      %v1804 = vpop.f32.mrb[0].mxu0
      %v1805 = vadd.f32 %v1657, %v1804
      %v1806 = vpop.f32.mrb[0].mxu0
      %v1807 = vadd.f32 %v1661, %v1806
      %1808 = vmatprep.mubr.bf16.mxu0 0
      %1809 = vmatmul.mubr.bf16.gmra.mrb[0].mxu0 %v1695
      %v1810 = vpop.f32.mrb[0].mxu0
      %v1811 = vadd.f32 %v1657, %v1810
      %v1812 = vpop.f32.mrb[0].mxu0
      %v1813 = vadd.f32 %v1661, %v1812
      %v1814 = vpop.f32.mrb[0].mxu0
      %v1815 = vadd.f32 %v1657, %v1814
      %v1816 = vpop.f32.mrb[0].mxu0
      %v1817 = vadd.f32 %v1661, %v1816
      %1818 = vdwg.mxu0
      %v1819 = vpack.c.bf16 %v1745, %v1741
      %v1820 = vpack.c.bf16 %v1747, %v1743
      %v1821 = vpack.c.bf16 %v1755, %v1751
      %v1822 = vpack.c.bf16 %v1757, %v1753
      %v1823 = vpack.c.bf16 %v1765, %v1761
      %v1824 = vpack.c.bf16 %v1767, %v1763
      %v1825 = vpack.c.bf16 %v1775, %v1771
      %v1826 = vpack.c.bf16 %v1777, %v1773
      %v1827 = vpack.c.bf16 %v1785, %v1781
      %v1828 = vpack.c.bf16 %v1787, %v1783
      %v1829 = vpack.c.bf16 %v1795, %v1791
      %v1830 = vpack.c.bf16 %v1797, %v1793
      %v1831 = vpack.c.bf16 %v1805, %v1801
      %v1832 = vpack.c.bf16 %v1807, %v1803
      %v1833 = vpack.c.bf16 %v1815, %v1811
      %v1834 = vpack.c.bf16 %v1817, %v1813
      %v1851 = vunpack.c.l.b16 %v1819
      %v1852 = vunpack.c.l.b16 %v1820
      %v1853 = vunpack.c.h.b16 %v1819
      %v1854 = vunpack.c.h.b16 %v1820
      %v1855 = vunpack.c.l.b16 %v1821
      %v1856 = vunpack.c.l.b16 %v1822
      %v1857 = vunpack.c.h.b16 %v1821
      %v1858 = vunpack.c.h.b16 %v1822
      %v1859 = vunpack.c.l.b16 %v1823
      %v1860 = vunpack.c.l.b16 %v1824
      %v1861 = vunpack.c.h.b16 %v1823
      %v1862 = vunpack.c.h.b16 %v1824
      %v1863 = vunpack.c.l.b16 %v1825
      %v1864 = vunpack.c.l.b16 %v1826
      %v1865 = vunpack.c.h.b16 %v1825
      %v1866 = vunpack.c.h.b16 %v1826
      %v1867 = vunpack.c.l.b16 %v1827
      %v1868 = vunpack.c.l.b16 %v1828
      %v1869 = vunpack.c.h.b16 %v1827
      %v1870 = vunpack.c.h.b16 %v1828
      %v1871 = vunpack.c.l.b16 %v1829
      %v1872 = vunpack.c.l.b16 %v1830
      %v1873 = vunpack.c.h.b16 %v1829
      %v1874 = vunpack.c.h.b16 %v1830
      %v1875 = vunpack.c.l.b16 %v1831
      %v1876 = vunpack.c.l.b16 %v1832
      %v1877 = vunpack.c.h.b16 %v1831
      %v1878 = vunpack.c.h.b16 %v1832
      %v1879 = vunpack.c.l.b16 %v1833
      %v1880 = vunpack.c.l.b16 %v1834
      %v1881 = vunpack.c.h.b16 %v1833
      %v1882 = vunpack.c.h.b16 %v1834
      %v1883 = vpack.c.b16 %v1852, %v1851
      %v1884 = vpack.c.b16 %v1854, %v1853
      %v1885 = vpack.c.b16 %v1856, %v1855
      %v1886 = vpack.c.b16 %v1858, %v1857
      %v1887 = vpack.c.b16 %v1860, %v1859
      %v1888 = vpack.c.b16 %v1862, %v1861
      %v1889 = vpack.c.b16 %v1864, %v1863
      %v1890 = vpack.c.b16 %v1866, %v1865
      %v1891 = vpack.c.b16 %v1868, %v1867
      %v1892 = vpack.c.b16 %v1870, %v1869
      %v1893 = vpack.c.b16 %v1872, %v1871
      %v1894 = vpack.c.b16 %v1874, %v1873
      %v1895 = vpack.c.b16 %v1876, %v1875
      %v1896 = vpack.c.b16 %v1878, %v1877
      %v1897 = vpack.c.b16 %v1880, %v1879
      %v1898 = vpack.c.b16 %v1882, %v1881
      %vm1915 = vcmask 228356
      %vm1916 = vmor %vm1915, %vm1157
      %1917 = vst.msk [vmem:[%s488] sm:$0xff] %vm1916, %v1883
      %1918 = vst.msk [vmem:[%s488 + $0x8] sm:$0xff] %vm1916, %v1884
      %1919 = vst.msk [vmem:[%s488 + $0x10] sm:$0xff] %vm1916, %v1885
      %1920 = vst.msk [vmem:[%s488 + $0x18] sm:$0xff] %vm1916, %v1886
      %1921 = vst.msk [vmem:[%s488 + $0x20] sm:$0xff] %vm1916, %v1887
      %1922 = vst.msk [vmem:[%s488 + $0x28] sm:$0xff] %vm1916, %v1888
      %1923 = vst.msk [vmem:[%s488 + $0x30] sm:$0xff] %vm1916, %v1889
      %1924 = vst.msk [vmem:[%s488 + $0x38] sm:$0xff] %vm1916, %v1890
      %1925 = vst.msk [vmem:[%s488 + $0x40] sm:$0xff] %vm1916, %v1891
      %1926 = vst.msk [vmem:[%s488 + $0x48] sm:$0xff] %vm1916, %v1892
      %1927 = vst.msk [vmem:[%s488 + $0x50] sm:$0xff] %vm1916, %v1893
      %1928 = vst.msk [vmem:[%s488 + $0x58] sm:$0xff] %vm1916, %v1894
      %1929 = vst.msk [vmem:[%s488 + $0x60] sm:$0xff] %vm1916, %v1895
      %1930 = vst.msk [vmem:[%s488 + $0x68] sm:$0xff] %vm1916, %v1896
      %1931 = vst.msk [vmem:[%s488 + $0x70] sm:$0xff] %vm1916, %v1897
      %1932 = vst.msk [vmem:[%s488 + $0x78] sm:$0xff] %vm1916, %v1898
      %s1933 = smul.u32 16, %s26
      %p1934 = scmp.lt.s32.totalorder %s1933, 31
      %s1935 = scalar_select %p1934, %s1933, 31
      %s1936 = smul.addr %s1935, 8
      %s1937 = scalar_lea.vmem %s13, %s1936
      %s1938 = smul.u32 16, %s26
      %p1939 = scmp.lt.s32.totalorder %s1938, 31
      %s1940 = scalar_select %p1939, %s1938, 31
      %s1941 = smul.addr %s1940, 2
      %s1942 = smul.addr %s1941, 4
      %s1943 = scalar_lea.vmem %s14, %s1942
      // Predicated region
      $region73: #{tpu_custom_call.1} parent=71 // pred_check
        %p1944 = pneg %p322
      $region74: #{tpu_custom_call.1} parent=71 // pred_check_branch
        %1946 = sbr.rel (%p1944) target = $region76
      $region75: #{tpu_custom_call.1} parent=71 // pred_region
        %s1947 = smul.u32 16, %s26
      $region76: #{tpu_custom_call.1} parent=71 // pred_fallthru
        _
      // Predicated region
      $region77: #{tpu_custom_call.1} parent=71 // pred_check
        %p1948 = pneg %p348
      $region78: #{tpu_custom_call.1} parent=71 // pred_check_branch
        %1950 = sbr.rel (%p1948) target = $region80
      $region79: #{tpu_custom_call.1} parent=71 // pred_region
        %s1951 = smul.u32 16, %s26
      $region80: #{tpu_custom_call.1} parent=71 // pred_fallthru
        _
    $region72: #{tpu_custom_call.1} parent=5 // pred_fallthru
      _
    %p1952 = scmp.le.s32.totalorder 2, %s21
    // Predicated region
    $region81: #{tpu_custom_call.1} parent=5 // pred_check
      %p1953 = pneg %p1952
    $region82: #{tpu_custom_call.1} parent=5 // pred_check_branch
      %1955 = sbr.rel (%p1953) target = $region84
    $region83: #{tpu_custom_call.1} parent=5 // pred_region
      %s1956 = ssub.s32 %s21, 2
      // Predicated region
      $region85: #{tpu_custom_call.1} parent=83 // pred_check
        %p1957 = pneg %p328
      $region86: #{tpu_custom_call.1} parent=83 // pred_check_branch
        %1959 = sbr.rel (%p1957) target = $region88
      $region87: #{tpu_custom_call.1} parent=83 // pred_region
        %s1960 = smul.u32 16, %s27
        %p1961 = scmp.lt.s32.totalorder %s1960, 31
        %s1962 = scalar_select %p1961, %s1960, 31
        %s1963 = smul.addr %s1962, 8
        %s1964 = scalar_lea.vmem %s13, %s1963
      $region88: #{tpu_custom_call.1} parent=83 // pred_fallthru
        _
      // Predicated region
      $region89: #{tpu_custom_call.1} parent=83 // pred_check
        %p1965 = pneg %p354
      $region90: #{tpu_custom_call.1} parent=83 // pred_check_branch
        %1967 = sbr.rel (%p1965) target = $region92
      $region91: #{tpu_custom_call.1} parent=83 // pred_region
        %s1968 = smul.u32 16, %s27
        %p1969 = scmp.lt.s32.totalorder %s1968, 31
        %s1970 = scalar_select %p1969, %s1968, 31
        %s1971 = smul.addr %s1970, 2
        %s1972 = smul.addr %s1971, 4
        %s1973 = scalar_lea.vmem %s14, %s1972
      $region92: #{tpu_custom_call.1} parent=83 // pred_fallthru
        _
    $region84: #{tpu_custom_call.1} parent=5 // pred_fallthru
      _
  $region6: #{tpu_custom_call.1} parent=0 // loop_footer
    %s25 = sadd.s32 1, %s21
  $region7: #{tpu_custom_call.1} parent=0 // loop_footer_branch
    %20 = sbr.rel target = $region3
  $region8: #{tpu_custom_call.1} parent=0 // loop_exit
    _

</llo_original>
